<compile_context>
chip_gen: v7x
topology: tpu7x:2x2x1
jax: 0.10.0
libtpu: 0.0.40
codegen_flags: <defaults>
</compile_context>

<pallas_src>
import jax
import jax.numpy as jnp
import numpy as np
from jax.experimental import pallas as pl
from jax.experimental.pallas import tpu as pltpu

# ---------------- small, module-consistent configuration ----------------
B = 2          # batch
INPUT = 64     # input_size   (module default 300, scaled down)
HIDDEN = 128   # hidden_size  (module default 512, scaled down; lane-dense)
T = 8          # seq_len


def _encoder_kernel(x_ref, w_ref, b_ref, out_ref, gx_ref):
    """LSTM-over-sequence kernel.

    x_ref  : [T*B, INPUT]            time-major flattened input steps
    w_ref  : [INPUT+HIDDEN, 4*HID]   rows [0:INPUT] = W_ih^T, rows [INPUT:] = W_hh^T
    b_ref  : [1, 4*HID]              b_ih + b_hh
    out_ref: [T, B, HIDDEN]          hidden-state history (time-major)
    gx_ref : [T*B, 4*HID]            VMEM scratch for the fused input projection
    """
    f32 = jnp.float32

    # ---- fused input projection for ALL timesteps: one MXU push instead of T ----
    gx_ref[...] = (
        jnp.dot(x_ref[...], w_ref[0:INPUT, :], preferred_element_type=f32)
        + b_ref[...]
    )

    hx = jnp.zeros((B, HIDDEN), f32)   # module always starts from zero state
    cx = jnp.zeros((B, HIDDEN), f32)

    # ---- recurrent part: serialized by h/c dependency; fully unrolled (T static) ----
    for t in range(T):
        gates = gx_ref[t * B:(t + 1) * B, :] + jnp.dot(
            hx, w_ref[INPUT:INPUT + HIDDEN, :], preferred_element_type=f32
        )                                              # [B, 4*HID]
        # one sigmoid over the whole gate vector (EUP), tanh only on the g block
        s = jax.nn.sigmoid(gates)
        i_g = s[:, 0 * HIDDEN:1 * HIDDEN]
        f_g = s[:, 1 * HIDDEN:2 * HIDDEN]
        g_g = jnp.tanh(gates[:, 2 * HIDDEN:3 * HIDDEN])
        o_g = s[:, 3 * HIDDEN:4 * HIDDEN]
        cx = f_g * cx + i_g * g_g
        hx = o_g * jnp.tanh(cx)
        out_ref[t] = hx                                # static first-axis store


def instruction_encoder_forward(x, w_ih, w_hh, b_ih, b_hh):
    """x: [B, input_size, seq_len] (PyTorch NCL layout). Returns [B, seq_len, hidden]."""
    assert x.shape[1] == INPUT, "Expected input with shape [batch, %d, seq_len]" % INPUT
    Bv, Iv, Tv = x.shape

    # plain-JAX glue: time-major flattened steps + packed parameter slab
    x_steps = jnp.transpose(x, (2, 0, 1)).reshape(Tv * Bv, Iv).astype(jnp.float32)
    w_slab = jnp.concatenate([w_ih.T, w_hh.T], axis=0).astype(jnp.float32)  # [(I+H), 4H]
    bias = (b_ih + b_hh).reshape(1, 4 * HIDDEN).astype(jnp.float32)

    out_tm = pl.pallas_call(
        _encoder_kernel,
        out_shape=jax.ShapeDtypeStruct((Tv, Bv, HIDDEN), jnp.float32),
        in_specs=[pl.BlockSpec(memory_space=pltpu.MemorySpace.VMEM)] * 3,
        out_specs=pl.BlockSpec(memory_space=pltpu.MemorySpace.VMEM),
        scratch_shapes=[pltpu.VMEM((Tv * Bv, 4 * HIDDEN), jnp.float32)],
    )(x_steps, w_slab, bias)

    return jnp.transpose(out_tm, (1, 0, 2))   # [B, T, HIDDEN]


# ---------------- pure-JAX reference (torch-style formulation) ----------------
def reference(x, w_ih, w_hh, b_ih, b_hh):
    Bv, Iv, Tv = x.shape
    hx = jnp.zeros((Bv, HIDDEN), jnp.float32)
    cx = jnp.zeros((Bv, HIDDEN), jnp.float32)
    hist = []
    for t in range(Tv):
        inp = x[:, :, t]                                            # forwd[..., seq]
        gates = inp @ w_ih.T + b_ih + hx @ w_hh.T + b_hh            # LSTMCell gates
        i_g, f_g, g_g, o_g = jnp.split(gates, 4, axis=-1)           # order: i, f, g, o
        cx = jax.nn.sigmoid(f_g) * cx + jax.nn.sigmoid(i_g) * jnp.tanh(g_g)
        hx = jax.nn.sigmoid(o_g) * jnp.tanh(cx)
        hist.append(hx)
    return jnp.stack(hist, axis=1)   # == torch.stack(history).transpose(0, 1)


if __name__ == "__main__":
    root = jax.random.PRNGKey(0)
    ks = jax.random.split(root, 8)

    def rnd(k, shape, scale=0.1):
        return (scale * jax.random.normal(k, shape)).astype(jnp.float32)

    # LSTMCell parameters (PyTorch [4*hidden, in] convention).  The module inits
    # biases to 0; nonzero biases are used here to exercise the bias path (forward
    # semantics are identical for any parameter values).
    w_ih = rnd(ks[0], (4 * HIDDEN, INPUT))
    w_hh = rnd(ks[1], (4 * HIDDEN, HIDDEN))
    b_ih = rnd(ks[2], (4 * HIDDEN,), 0.05)
    b_hh = rnd(ks[3], (4 * HIDDEN,), 0.05)

    # input in PyTorch layout [batch, input_size, seq_len]
    x = jax.random.normal(ks[4], (B, INPUT, T), jnp.float32)

    out = instruction_encoder_forward(x, w_ih, w_hh, b_ih, b_hh)
    jax.block_until_ready(out)

    with jax.default_matmul_precision("highest"):
        ref = reference(x, w_ih, w_hh, b_ih, b_hh)
    np.testing.assert_allclose(np.asarray(out), np.asarray(ref), rtol=1e-2, atol=1e-2)

    print("KERNEL_OK")
</pallas_src>

<mosaic_0001>
module attributes {stable_mosaic.version = 11 : i64} {
  func.func @_encoder_kernel(%arg0: memref<16x64xf32, #tpu.memory_space<vmem>>, %arg1: memref<192x512xf32, #tpu.memory_space<vmem>>, %arg2: memref<1x512xf32, #tpu.memory_space<vmem>>, %arg3: memref<8x2x128xf32, #tpu.memory_space<vmem>>, %arg4: memref<16x512xf32, #tpu.memory_space<vmem>>) attributes {dimension_semantics = [], scalar_prefetch = 0 : i64, scratch_operands = 1 : i64, tpu.core_type = #tpu.core_type<tc>} {
    %c0 = arith.constant 0 : index
    %c0_0 = arith.constant 0 : index
    %0 = vector.load %arg0[%c0, %c0_0] : memref<16x64xf32, #tpu.memory_space<vmem>>, vector<16x64xf32>
    %c0_1 = arith.constant 0 : index
    %c0_2 = arith.constant 0 : index
    %1 = vector.load %arg1[%c0_1, %c0_2] : memref<192x512xf32, #tpu.memory_space<vmem>>, vector<64x512xf32>
    %cst = arith.constant dense<0.000000e+00> : vector<16x512xf32>
    %2 = tpu.matmul %0, %1, %cst {dimension_numbers = #tpu.dot_dimension_numbers<[1], [0], [0], [1], [0, 0, 1, 1], [], []>} : vector<16x64xf32>, vector<64x512xf32>, vector<16x512xf32> -> vector<16x512xf32>
    %c0_3 = arith.constant 0 : index
    %c0_4 = arith.constant 0 : index
    %3 = vector.load %arg2[%c0_3, %c0_4] : memref<1x512xf32, #tpu.memory_space<vmem>>, vector<1x512xf32>
    %4 = vector.broadcast %3 : vector<1x512xf32> to vector<16x512xf32>
    %5 = arith.addf %2, %4 : vector<16x512xf32>
    %c0_5 = arith.constant 0 : index
    %c0_6 = arith.constant 0 : index
    %6 = vector.load %arg4[%c0_5, %c0_6] : memref<16x512xf32, #tpu.memory_space<vmem>>, vector<16x512xf32>
    tpu.vector_store %arg4[%c0_5, %c0_6], %5 {strides = array<i32>} : memref<16x512xf32, #tpu.memory_space<vmem>>, vector<16x512xf32>,
    %cst_7 = arith.constant 0.000000e+00 : f32
    %7 = vector.broadcast %cst_7 : f32 to vector<2x128xf32>
    %cst_8 = arith.constant 0.000000e+00 : f32
    %8 = vector.broadcast %cst_8 : f32 to vector<2x128xf32>
    %c0_9 = arith.constant 0 : index
    %c0_10 = arith.constant 0 : index
    %9 = vector.load %arg4[%c0_9, %c0_10] : memref<16x512xf32, #tpu.memory_space<vmem>>, vector<2x512xf32>
    %c64 = arith.constant 64 : index
    %c0_11 = arith.constant 0 : index
    %10 = vector.load %arg1[%c64, %c0_11] : memref<192x512xf32, #tpu.memory_space<vmem>>, vector<128x512xf32>
    %cst_12 = arith.constant dense<0.000000e+00> : vector<2x512xf32>
    %11 = tpu.matmul %7, %10, %cst_12 {dimension_numbers = #tpu.dot_dimension_numbers<[1], [0], [0], [1], [0, 0, 1, 1], [], []>} : vector<2x128xf32>, vector<128x512xf32>, vector<2x512xf32> -> vector<2x512xf32>
    %12 = arith.addf %9, %11 : vector<2x512xf32>
    %13 = arith.negf %12 : vector<2x512xf32>
    %14 = math.exp %13 : vector<2x512xf32>
    %cst_13 = arith.constant 1.000000e+00 : f32
    %15 = vector.broadcast %cst_13 : f32 to vector<2x512xf32>
    %16 = arith.addf %15, %14 : vector<2x512xf32>
    %17 = arith.divf %15, %16 : vector<2x512xf32>
    %18 = vector.extract_strided_slice %17 {offsets = [0, 0], sizes = [2, 128], strides = [1, 1]} : vector<2x512xf32> to vector<2x128xf32>
    %19 = vector.extract_strided_slice %17 {offsets = [0, 128], sizes = [2, 128], strides = [1, 1]} : vector<2x512xf32> to vector<2x128xf32>
    %20 = vector.extract_strided_slice %12 {offsets = [0, 256], sizes = [2, 128], strides = [1, 1]} : vector<2x512xf32> to vector<2x128xf32>
    %21 = math.tanh %20 : vector<2x128xf32>
    %22 = vector.extract_strided_slice %17 {offsets = [0, 384], sizes = [2, 128], strides = [1, 1]} : vector<2x512xf32> to vector<2x128xf32>
    %23 = arith.mulf %19, %8 : vector<2x128xf32>
    %24 = arith.mulf %18, %21 : vector<2x128xf32>
    %25 = arith.addf %23, %24 : vector<2x128xf32>
    %26 = math.tanh %25 : vector<2x128xf32>
    %27 = arith.mulf %22, %26 : vector<2x128xf32>
    %c0_14 = arith.constant 0 : index
    %c0_15 = arith.constant 0 : index
    %c0_16 = arith.constant 0 : index
    %28 = vector.load %arg3[%c0_14, %c0_15, %c0_16] : memref<8x2x128xf32, #tpu.memory_space<vmem>>, vector<1x2x128xf32>
    %29 = vector.shape_cast %28 : vector<1x2x128xf32> to vector<2x128xf32>
    %30 = vector.shape_cast %27 : vector<2x128xf32> to vector<1x2x128xf32>
    tpu.vector_store %arg3[%c0_14, %c0_15, %c0_16], %30 {strides = array<i32>} : memref<8x2x128xf32, #tpu.memory_space<vmem>>, vector<1x2x128xf32>,
    %c2 = arith.constant 2 : index
    %c0_17 = arith.constant 0 : index
    %31 = vector.load %arg4[%c2, %c0_17] : memref<16x512xf32, #tpu.memory_space<vmem>>, vector<2x512xf32>
    %c64_18 = arith.constant 64 : index
    %c0_19 = arith.constant 0 : index
    %32 = vector.load %arg1[%c64_18, %c0_19] : memref<192x512xf32, #tpu.memory_space<vmem>>, vector<128x512xf32>
    %cst_20 = arith.constant dense<0.000000e+00> : vector<2x512xf32>
    %33 = tpu.matmul %27, %32, %cst_20 {dimension_numbers = #tpu.dot_dimension_numbers<[1], [0], [0], [1], [0, 0, 1, 1], [], []>} : vector<2x128xf32>, vector<128x512xf32>, vector<2x512xf32> -> vector<2x512xf32>
    %34 = arith.addf %31, %33 : vector<2x512xf32>
    %35 = arith.negf %34 : vector<2x512xf32>
    %36 = math.exp %35 : vector<2x512xf32>
    %cst_21 = arith.constant 1.000000e+00 : f32
    %37 = vector.broadcast %cst_21 : f32 to vector<2x512xf32>
    %38 = arith.addf %37, %36 : vector<2x512xf32>
    %39 = arith.divf %37, %38 : vector<2x512xf32>
    %40 = vector.extract_strided_slice %39 {offsets = [0, 0], sizes = [2, 128], strides = [1, 1]} : vector<2x512xf32> to vector<2x128xf32>
    %41 = vector.extract_strided_slice %39 {offsets = [0, 128], sizes = [2, 128], strides = [1, 1]} : vector<2x512xf32> to vector<2x128xf32>
    %42 = vector.extract_strided_slice %34 {offsets = [0, 256], sizes = [2, 128], strides = [1, 1]} : vector<2x512xf32> to vector<2x128xf32>
    %43 = math.tanh %42 : vector<2x128xf32>
    %44 = vector.extract_strided_slice %39 {offsets = [0, 384], sizes = [2, 128], strides = [1, 1]} : vector<2x512xf32> to vector<2x128xf32>
    %45 = arith.mulf %41, %25 : vector<2x128xf32>
    %46 = arith.mulf %40, %43 : vector<2x128xf32>
    %47 = arith.addf %45, %46 : vector<2x128xf32>
    %48 = math.tanh %47 : vector<2x128xf32>
    %49 = arith.mulf %44, %48 : vector<2x128xf32>
    %c1 = arith.constant 1 : index
    %c0_22 = arith.constant 0 : index
    %c0_23 = arith.constant 0 : index
    %50 = vector.load %arg3[%c1, %c0_22, %c0_23] : memref<8x2x128xf32, #tpu.memory_space<vmem>>, vector<1x2x128xf32>
    %51 = vector.shape_cast %50 : vector<1x2x128xf32> to vector<2x128xf32>
    %52 = vector.shape_cast %49 : vector<2x128xf32> to vector<1x2x128xf32>
    tpu.vector_store %arg3[%c1, %c0_22, %c0_23], %52 {strides = array<i32>} : memref<8x2x128xf32, #tpu.memory_space<vmem>>, vector<1x2x128xf32>,
    %c4 = arith.constant 4 : index
    %c0_24 = arith.constant 0 : index
    %53 = vector.load %arg4[%c4, %c0_24] : memref<16x512xf32, #tpu.memory_space<vmem>>, vector<2x512xf32>
    %c64_25 = arith.constant 64 : index
    %c0_26 = arith.constant 0 : index
    %54 = vector.load %arg1[%c64_25, %c0_26] : memref<192x512xf32, #tpu.memory_space<vmem>>, vector<128x512xf32>
    %cst_27 = arith.constant dense<0.000000e+00> : vector<2x512xf32>
    %55 = tpu.matmul %49, %54, %cst_27 {dimension_numbers = #tpu.dot_dimension_numbers<[1], [0], [0], [1], [0, 0, 1, 1], [], []>} : vector<2x128xf32>, vector<128x512xf32>, vector<2x512xf32> -> vector<2x512xf32>
    %56 = arith.addf %53, %55 : vector<2x512xf32>
    %57 = arith.negf %56 : vector<2x512xf32>
    %58 = math.exp %57 : vector<2x512xf32>
    %cst_28 = arith.constant 1.000000e+00 : f32
    %59 = vector.broadcast %cst_28 : f32 to vector<2x512xf32>
    %60 = arith.addf %59, %58 : vector<2x512xf32>
    %61 = arith.divf %59, %60 : vector<2x512xf32>
    %62 = vector.extract_strided_slice %61 {offsets = [0, 0], sizes = [2, 128], strides = [1, 1]} : vector<2x512xf32> to vector<2x128xf32>
    %63 = vector.extract_strided_slice %61 {offsets = [0, 128], sizes = [2, 128], strides = [1, 1]} : vector<2x512xf32> to vector<2x128xf32>
    %64 = vector.extract_strided_slice %56 {offsets = [0, 256], sizes = [2, 128], strides = [1, 1]} : vector<2x512xf32> to vector<2x128xf32>
    %65 = math.tanh %64 : vector<2x128xf32>
    %66 = vector.extract_strided_slice %61 {offsets = [0, 384], sizes = [2, 128], strides = [1, 1]} : vector<2x512xf32> to vector<2x128xf32>
    %67 = arith.mulf %63, %47 : vector<2x128xf32>
    %68 = arith.mulf %62, %65 : vector<2x128xf32>
    %69 = arith.addf %67, %68 : vector<2x128xf32>
    %70 = math.tanh %69 : vector<2x128xf32>
    %71 = arith.mulf %66, %70 : vector<2x128xf32>
    %c2_29 = arith.constant 2 : index
    %c0_30 = arith.constant 0 : index
    %c0_31 = arith.constant 0 : index
    %72 = vector.load %arg3[%c2_29, %c0_30, %c0_31] : memref<8x2x128xf32, #tpu.memory_space<vmem>>, vector<1x2x128xf32>
    %73 = vector.shape_cast %72 : vector<1x2x128xf32> to vector<2x128xf32>
    %74 = vector.shape_cast %71 : vector<2x128xf32> to vector<1x2x128xf32>
    tpu.vector_store %arg3[%c2_29, %c0_30, %c0_31], %74 {strides = array<i32>} : memref<8x2x128xf32, #tpu.memory_space<vmem>>, vector<1x2x128xf32>,
    %c6 = arith.constant 6 : index
    %c0_32 = arith.constant 0 : index
    %75 = vector.load %arg4[%c6, %c0_32] : memref<16x512xf32, #tpu.memory_space<vmem>>, vector<2x512xf32>
    %c64_33 = arith.constant 64 : index
    %c0_34 = arith.constant 0 : index
    %76 = vector.load %arg1[%c64_33, %c0_34] : memref<192x512xf32, #tpu.memory_space<vmem>>, vector<128x512xf32>
    %cst_35 = arith.constant dense<0.000000e+00> : vector<2x512xf32>
    %77 = tpu.matmul %71, %76, %cst_35 {dimension_numbers = #tpu.dot_dimension_numbers<[1], [0], [0], [1], [0, 0, 1, 1], [], []>} : vector<2x128xf32>, vector<128x512xf32>, vector<2x512xf32> -> vector<2x512xf32>
    %78 = arith.addf %75, %77 : vector<2x512xf32>
    %79 = arith.negf %78 : vector<2x512xf32>
    %80 = math.exp %79 : vector<2x512xf32>
    %cst_36 = arith.constant 1.000000e+00 : f32
    %81 = vector.broadcast %cst_36 : f32 to vector<2x512xf32>
    %82 = arith.addf %81, %80 : vector<2x512xf32>
    %83 = arith.divf %81, %82 : vector<2x512xf32>
    %84 = vector.extract_strided_slice %83 {offsets = [0, 0], sizes = [2, 128], strides = [1, 1]} : vector<2x512xf32> to vector<2x128xf32>
    %85 = vector.extract_strided_slice %83 {offsets = [0, 128], sizes = [2, 128], strides = [1, 1]} : vector<2x512xf32> to vector<2x128xf32>
    %86 = vector.extract_strided_slice %78 {offsets = [0, 256], sizes = [2, 128], strides = [1, 1]} : vector<2x512xf32> to vector<2x128xf32>
    %87 = math.tanh %86 : vector<2x128xf32>
    %88 = vector.extract_strided_slice %83 {offsets = [0, 384], sizes = [2, 128], strides = [1, 1]} : vector<2x512xf32> to vector<2x128xf32>
    %89 = arith.mulf %85, %69 : vector<2x128xf32>
    %90 = arith.mulf %84, %87 : vector<2x128xf32>
    %91 = arith.addf %89, %90 : vector<2x128xf32>
    %92 = math.tanh %91 : vector<2x128xf32>
    %93 = arith.mulf %88, %92 : vector<2x128xf32>
    %c3 = arith.constant 3 : index
    %c0_37 = arith.constant 0 : index
    %c0_38 = arith.constant 0 : index
    %94 = vector.load %arg3[%c3, %c0_37, %c0_38] : memref<8x2x128xf32, #tpu.memory_space<vmem>>, vector<1x2x128xf32>
    %95 = vector.shape_cast %94 : vector<1x2x128xf32> to vector<2x128xf32>
    %96 = vector.shape_cast %93 : vector<2x128xf32> to vector<1x2x128xf32>
    tpu.vector_store %arg3[%c3, %c0_37, %c0_38], %96 {strides = array<i32>} : memref<8x2x128xf32, #tpu.memory_space<vmem>>, vector<1x2x128xf32>,
    %c8 = arith.constant 8 : index
    %c0_39 = arith.constant 0 : index
    %97 = vector.load %arg4[%c8, %c0_39] : memref<16x512xf32, #tpu.memory_space<vmem>>, vector<2x512xf32>
    %c64_40 = arith.constant 64 : index
    %c0_41 = arith.constant 0 : index
    %98 = vector.load %arg1[%c64_40, %c0_41] : memref<192x512xf32, #tpu.memory_space<vmem>>, vector<128x512xf32>
    %cst_42 = arith.constant dense<0.000000e+00> : vector<2x512xf32>
    %99 = tpu.matmul %93, %98, %cst_42 {dimension_numbers = #tpu.dot_dimension_numbers<[1], [0], [0], [1], [0, 0, 1, 1], [], []>} : vector<2x128xf32>, vector<128x512xf32>, vector<2x512xf32> -> vector<2x512xf32>
    %100 = arith.addf %97, %99 : vector<2x512xf32>
    %101 = arith.negf %100 : vector<2x512xf32>
    %102 = math.exp %101 : vector<2x512xf32>
    %cst_43 = arith.constant 1.000000e+00 : f32
    %103 = vector.broadcast %cst_43 : f32 to vector<2x512xf32>
    %104 = arith.addf %103, %102 : vector<2x512xf32>
    %105 = arith.divf %103, %104 : vector<2x512xf32>
    %106 = vector.extract_strided_slice %105 {offsets = [0, 0], sizes = [2, 128], strides = [1, 1]} : vector<2x512xf32> to vector<2x128xf32>
    %107 = vector.extract_strided_slice %105 {offsets = [0, 128], sizes = [2, 128], strides = [1, 1]} : vector<2x512xf32> to vector<2x128xf32>
    %108 = vector.extract_strided_slice %100 {offsets = [0, 256], sizes = [2, 128], strides = [1, 1]} : vector<2x512xf32> to vector<2x128xf32>
    %109 = math.tanh %108 : vector<2x128xf32>
    %110 = vector.extract_strided_slice %105 {offsets = [0, 384], sizes = [2, 128], strides = [1, 1]} : vector<2x512xf32> to vector<2x128xf32>
    %111 = arith.mulf %107, %91 : vector<2x128xf32>
    %112 = arith.mulf %106, %109 : vector<2x128xf32>
    %113 = arith.addf %111, %112 : vector<2x128xf32>
    %114 = math.tanh %113 : vector<2x128xf32>
    %115 = arith.mulf %110, %114 : vector<2x128xf32>
    %c4_44 = arith.constant 4 : index
    %c0_45 = arith.constant 0 : index
    %c0_46 = arith.constant 0 : index
    %116 = vector.load %arg3[%c4_44, %c0_45, %c0_46] : memref<8x2x128xf32, #tpu.memory_space<vmem>>, vector<1x2x128xf32>
    %117 = vector.shape_cast %116 : vector<1x2x128xf32> to vector<2x128xf32>
    %118 = vector.shape_cast %115 : vector<2x128xf32> to vector<1x2x128xf32>
    tpu.vector_store %arg3[%c4_44, %c0_45, %c0_46], %118 {strides = array<i32>} : memref<8x2x128xf32, #tpu.memory_space<vmem>>, vector<1x2x128xf32>,
    %c10 = arith.constant 10 : index
    %c0_47 = arith.constant 0 : index
    %119 = vector.load %arg4[%c10, %c0_47] : memref<16x512xf32, #tpu.memory_space<vmem>>, vector<2x512xf32>
    %c64_48 = arith.constant 64 : index
    %c0_49 = arith.constant 0 : index
    %120 = vector.load %arg1[%c64_48, %c0_49] : memref<192x512xf32, #tpu.memory_space<vmem>>, vector<128x512xf32>
    %cst_50 = arith.constant dense<0.000000e+00> : vector<2x512xf32>
    %121 = tpu.matmul %115, %120, %cst_50 {dimension_numbers = #tpu.dot_dimension_numbers<[1], [0], [0], [1], [0, 0, 1, 1], [], []>} : vector<2x128xf32>, vector<128x512xf32>, vector<2x512xf32> -> vector<2x512xf32>
    %122 = arith.addf %119, %121 : vector<2x512xf32>
    %123 = arith.negf %122 : vector<2x512xf32>
    %124 = math.exp %123 : vector<2x512xf32>
    %cst_51 = arith.constant 1.000000e+00 : f32
    %125 = vector.broadcast %cst_51 : f32 to vector<2x512xf32>
    %126 = arith.addf %125, %124 : vector<2x512xf32>
    %127 = arith.divf %125, %126 : vector<2x512xf32>
    %128 = vector.extract_strided_slice %127 {offsets = [0, 0], sizes = [2, 128], strides = [1, 1]} : vector<2x512xf32> to vector<2x128xf32>
    %129 = vector.extract_strided_slice %127 {offsets = [0, 128], sizes = [2, 128], strides = [1, 1]} : vector<2x512xf32> to vector<2x128xf32>
    %130 = vector.extract_strided_slice %122 {offsets = [0, 256], sizes = [2, 128], strides = [1, 1]} : vector<2x512xf32> to vector<2x128xf32>
    %131 = math.tanh %130 : vector<2x128xf32>
    %132 = vector.extract_strided_slice %127 {offsets = [0, 384], sizes = [2, 128], strides = [1, 1]} : vector<2x512xf32> to vector<2x128xf32>
    %133 = arith.mulf %129, %113 : vector<2x128xf32>
    %134 = arith.mulf %128, %131 : vector<2x128xf32>
    %135 = arith.addf %133, %134 : vector<2x128xf32>
    %136 = math.tanh %135 : vector<2x128xf32>
    %137 = arith.mulf %132, %136 : vector<2x128xf32>
    %c5 = arith.constant 5 : index
    %c0_52 = arith.constant 0 : index
    %c0_53 = arith.constant 0 : index
    %138 = vector.load %arg3[%c5, %c0_52, %c0_53] : memref<8x2x128xf32, #tpu.memory_space<vmem>>, vector<1x2x128xf32>
    %139 = vector.shape_cast %138 : vector<1x2x128xf32> to vector<2x128xf32>
    %140 = vector.shape_cast %137 : vector<2x128xf32> to vector<1x2x128xf32>
    tpu.vector_store %arg3[%c5, %c0_52, %c0_53], %140 {strides = array<i32>} : memref<8x2x128xf32, #tpu.memory_space<vmem>>, vector<1x2x128xf32>,
    %c12 = arith.constant 12 : index
    %c0_54 = arith.constant 0 : index
    %141 = vector.load %arg4[%c12, %c0_54] : memref<16x512xf32, #tpu.memory_space<vmem>>, vector<2x512xf32>
    %c64_55 = arith.constant 64 : index
    %c0_56 = arith.constant 0 : index
    %142 = vector.load %arg1[%c64_55, %c0_56] : memref<192x512xf32, #tpu.memory_space<vmem>>, vector<128x512xf32>
    %cst_57 = arith.constant dense<0.000000e+00> : vector<2x512xf32>
    %143 = tpu.matmul %137, %142, %cst_57 {dimension_numbers = #tpu.dot_dimension_numbers<[1], [0], [0], [1], [0, 0, 1, 1], [], []>} : vector<2x128xf32>, vector<128x512xf32>, vector<2x512xf32> -> vector<2x512xf32>
    %144 = arith.addf %141, %143 : vector<2x512xf32>
    %145 = arith.negf %144 : vector<2x512xf32>
    %146 = math.exp %145 : vector<2x512xf32>
    %cst_58 = arith.constant 1.000000e+00 : f32
    %147 = vector.broadcast %cst_58 : f32 to vector<2x512xf32>
    %148 = arith.addf %147, %146 : vector<2x512xf32>
    %149 = arith.divf %147, %148 : vector<2x512xf32>
    %150 = vector.extract_strided_slice %149 {offsets = [0, 0], sizes = [2, 128], strides = [1, 1]} : vector<2x512xf32> to vector<2x128xf32>
    %151 = vector.extract_strided_slice %149 {offsets = [0, 128], sizes = [2, 128], strides = [1, 1]} : vector<2x512xf32> to vector<2x128xf32>
    %152 = vector.extract_strided_slice %144 {offsets = [0, 256], sizes = [2, 128], strides = [1, 1]} : vector<2x512xf32> to vector<2x128xf32>
    %153 = math.tanh %152 : vector<2x128xf32>
    %154 = vector.extract_strided_slice %149 {offsets = [0, 384], sizes = [2, 128], strides = [1, 1]} : vector<2x512xf32> to vector<2x128xf32>
    %155 = arith.mulf %151, %135 : vector<2x128xf32>
    %156 = arith.mulf %150, %153 : vector<2x128xf32>
    %157 = arith.addf %155, %156 : vector<2x128xf32>
    %158 = math.tanh %157 : vector<2x128xf32>
    %159 = arith.mulf %154, %158 : vector<2x128xf32>
    %c6_59 = arith.constant 6 : index
    %c0_60 = arith.constant 0 : index
    %c0_61 = arith.constant 0 : index
    %160 = vector.load %arg3[%c6_59, %c0_60, %c0_61] : memref<8x2x128xf32, #tpu.memory_space<vmem>>, vector<1x2x128xf32>
    %161 = vector.shape_cast %160 : vector<1x2x128xf32> to vector<2x128xf32>
    %162 = vector.shape_cast %159 : vector<2x128xf32> to vector<1x2x128xf32>
    tpu.vector_store %arg3[%c6_59, %c0_60, %c0_61], %162 {strides = array<i32>} : memref<8x2x128xf32, #tpu.memory_space<vmem>>, vector<1x2x128xf32>,
    %c14 = arith.constant 14 : index
    %c0_62 = arith.constant 0 : index
    %163 = vector.load %arg4[%c14, %c0_62] : memref<16x512xf32, #tpu.memory_space<vmem>>, vector<2x512xf32>
    %c64_63 = arith.constant 64 : index
    %c0_64 = arith.constant 0 : index
    %164 = vector.load %arg1[%c64_63, %c0_64] : memref<192x512xf32, #tpu.memory_space<vmem>>, vector<128x512xf32>
    %cst_65 = arith.constant dense<0.000000e+00> : vector<2x512xf32>
    %165 = tpu.matmul %159, %164, %cst_65 {dimension_numbers = #tpu.dot_dimension_numbers<[1], [0], [0], [1], [0, 0, 1, 1], [], []>} : vector<2x128xf32>, vector<128x512xf32>, vector<2x512xf32> -> vector<2x512xf32>
    %166 = arith.addf %163, %165 : vector<2x512xf32>
    %167 = arith.negf %166 : vector<2x512xf32>
    %168 = math.exp %167 : vector<2x512xf32>
    %cst_66 = arith.constant 1.000000e+00 : f32
    %169 = vector.broadcast %cst_66 : f32 to vector<2x512xf32>
    %170 = arith.addf %169, %168 : vector<2x512xf32>
    %171 = arith.divf %169, %170 : vector<2x512xf32>
    %172 = vector.extract_strided_slice %171 {offsets = [0, 0], sizes = [2, 128], strides = [1, 1]} : vector<2x512xf32> to vector<2x128xf32>
    %173 = vector.extract_strided_slice %171 {offsets = [0, 128], sizes = [2, 128], strides = [1, 1]} : vector<2x512xf32> to vector<2x128xf32>
    %174 = vector.extract_strided_slice %166 {offsets = [0, 256], sizes = [2, 128], strides = [1, 1]} : vector<2x512xf32> to vector<2x128xf32>
    %175 = math.tanh %174 : vector<2x128xf32>
    %176 = vector.extract_strided_slice %171 {offsets = [0, 384], sizes = [2, 128], strides = [1, 1]} : vector<2x512xf32> to vector<2x128xf32>
    %177 = arith.mulf %173, %157 : vector<2x128xf32>
    %178 = arith.mulf %172, %175 : vector<2x128xf32>
    %179 = arith.addf %177, %178 : vector<2x128xf32>
    %180 = math.tanh %179 : vector<2x128xf32>
    %181 = arith.mulf %176, %180 : vector<2x128xf32>
    %c7 = arith.constant 7 : index
    %c0_67 = arith.constant 0 : index
    %c0_68 = arith.constant 0 : index
    %182 = vector.load %arg3[%c7, %c0_67, %c0_68] : memref<8x2x128xf32, #tpu.memory_space<vmem>>, vector<1x2x128xf32>
    %183 = vector.shape_cast %182 : vector<1x2x128xf32> to vector<2x128xf32>
    %184 = vector.shape_cast %181 : vector<2x128xf32> to vector<1x2x128xf32>
    tpu.vector_store %arg3[%c7, %c0_67, %c0_68], %184 {strides = array<i32>} : memref<8x2x128xf32, #tpu.memory_space<vmem>>, vector<1x2x128xf32>,
    return
  }
}

</mosaic_0001>

<llo_original>
// kernel: tpu_custom_call.1
$region0: #{tpu_custom_call.1}
  #allocation0 [shape = 'u32[]', space=smem, size = 0x4, offset = 0x4, fixed_abs, tag = 'smem constant byte address 0x4 - core index']
  #allocation1 [shape = 'u32[144,128]{1,0:T(1,128)}', space=vmem, size = 0x12000, scoped, tag = 'internal scratch']
  #allocation2 [shape = 'f32[16,512]{1,0:T(8,128)}', space=vmem, size = 0x8000, scoped, tag = 'scratch operand']
  %s0 = inlined_call_operand.hbm [shape: f32[16,64], index: 0, kind: input, shape index: {}]
  %s1 = inlined_call_operand.hbm [shape: f32[192,512], index: 1, kind: input, shape index: {}]
  %s2 = inlined_call_operand.vmem [shape: f32[1,512], index: 2, kind: input, shape index: {}]
  %s3 = inlined_call_operand.hbm [shape: f32[8,2,128], index: 3, kind: output, shape index: {}]
  %s4 = sld [smem:[#allocation0]]
  $region30: #{tpu_custom_call.1} parent=0
    _
  %s6 = ssub.s32 1, %s4
  %s7 = scalar_select 0, %s6, %s4
  $region1: #{tpu_custom_call.1} parent=0
    #allocation3 [shape = 'u8[8192]{0}', space=vmem, size = 0x2000, scoped, tag = 'input window, operand 0, single buffered']
    #allocation4 [shape = 's32[1]{0}', space=sflag, size = 0x4, scoped, tag = 'scoped memory for tpu_custom_call.1']
    #allocation5 [shape = 's32[1]{0}', space=sflag, size = 0x4, scoped, tag = 'scoped memory for tpu_custom_call.1']
    #allocation6 [shape = 'u8[393216]{0}', space=vmem, size = 0x60000, scoped, tag = 'input window, operand 1, single buffered']
    #allocation7 [shape = 's32[1]{0}', space=sflag, size = 0x4, scoped, tag = 'scoped memory for tpu_custom_call.1']
    #allocation8 [shape = 'u8[8192]{0}', space=vmem, size = 0x2000, scoped, tag = 'output window, operand 0, single buffered']
    %8 = vsyncpa [#allocation4], 0
    %9 = vsyncpa [#allocation7], 0
    %10 = vsyncpa [#allocation5], 0
    // Predicated region
    $region2: #{tpu_custom_call.1} parent=1 // pred_check
      _
    $region3: #{tpu_custom_call.1} parent=1 // pred_check_branch
      %12 = sbr.rel (0) target = $region5
    $region4: #{tpu_custom_call.1} parent=1 // pred_region
      %s14 = ssub.s32 256, 256
      %15 = vsyncadd [#allocation4], %s14
      %s16 = sshll.u32 [#allocation3], 4
      %s17 = int_to_ptr.vmem [resolvable:$true] %s16
      %22 = dma.hbm_to_vmem [thread:$0]  %s0, 256, %s17, [#allocation4], 128, 128, 8
    $region5: #{tpu_custom_call.1} parent=1 // pred_fallthru
      _
    // Predicated region
    $region6: #{tpu_custom_call.1} parent=1 // pred_check
      _
    $region7: #{tpu_custom_call.1} parent=1 // pred_check_branch
      %24 = sbr.rel (0) target = $region9
    $region8: #{tpu_custom_call.1} parent=1 // pred_region
      %s26 = ssub.s32 12288, 12288
      %27 = vsyncadd [#allocation7], %s26
      %s28 = sshll.u32 [#allocation6], 4
      %s29 = int_to_ptr.vmem [resolvable:$true] %s28
      %34 = dma.hbm_to_vmem [thread:$0]  %s1, 12288, %s29, [#allocation7], 512, 512, 32
    $region9: #{tpu_custom_call.1} parent=1 // pred_fallthru
      _
    // Predicated region
    $region10: #{tpu_custom_call.1} parent=1 // pred_check
      _
    $region11: #{tpu_custom_call.1} parent=1 // pred_check_branch
      %36 = sbr.rel (0) target = $region13
    $region12: #{tpu_custom_call.1} parent=1 // pred_region
      _
    $region13: #{tpu_custom_call.1} parent=1 // pred_fallthru
      _
    // Predicated region
    $region14: #{tpu_custom_call.1} parent=1 // pred_check
      _
    $region15: #{tpu_custom_call.1} parent=1 // pred_check_branch
      %38 = sbr.rel (0) target = $region17
    $region16: #{tpu_custom_call.1} parent=1 // pred_region
      %39 = dma.done [#allocation4], 256
    $region17: #{tpu_custom_call.1} parent=1 // pred_fallthru
      _
    // Predicated region
    $region18: #{tpu_custom_call.1} parent=1 // pred_check
      _
    $region19: #{tpu_custom_call.1} parent=1 // pred_check_branch
      %41 = sbr.rel (0) target = $region21
    $region20: #{tpu_custom_call.1} parent=1 // pred_region
      %42 = dma.done [#allocation7], 12288
    $region21: #{tpu_custom_call.1} parent=1 // pred_fallthru
      _
    %v43 = vld [vmem:[#allocation3] sm:$0xff]
    %v44 = vld [vmem:[#allocation3 + $0x8] sm:$0xff]
    %v45 = vld [vmem:[#allocation6] sm:$0xff]
    %v46 = vld [vmem:[#allocation6 + $0x8] sm:$0xff]
    %v47 = vld [vmem:[#allocation6 + $0x10] sm:$0xff]
    %v48 = vld [vmem:[#allocation6 + $0x18] sm:$0xff]
    %v49 = vld [vmem:[#allocation6 + $0x20] sm:$0xff]
    %v50 = vld [vmem:[#allocation6 + $0x28] sm:$0xff]
    %v51 = vld [vmem:[#allocation6 + $0x30] sm:$0xff]
    %v52 = vld [vmem:[#allocation6 + $0x38] sm:$0xff]
    %v53 = vld [vmem:[#allocation6 + $0x40] sm:$0xff]
    %v54 = vld [vmem:[#allocation6 + $0x48] sm:$0xff]
    %v55 = vld [vmem:[#allocation6 + $0x50] sm:$0xff]
    %v56 = vld [vmem:[#allocation6 + $0x58] sm:$0xff]
    %v57 = vld [vmem:[#allocation6 + $0x60] sm:$0xff]
    %v58 = vld [vmem:[#allocation6 + $0x68] sm:$0xff]
    %v59 = vld [vmem:[#allocation6 + $0x70] sm:$0xff]
    %v60 = vld [vmem:[#allocation6 + $0x78] sm:$0xff]
    %v61 = vld [vmem:[#allocation6 + $0x80] sm:$0xff]
    %v62 = vld [vmem:[#allocation6 + $0x88] sm:$0xff]
    %v63 = vld [vmem:[#allocation6 + $0x90] sm:$0xff]
    %v64 = vld [vmem:[#allocation6 + $0x98] sm:$0xff]
    %v65 = vld [vmem:[#allocation6 + $0xa0] sm:$0xff]
    %v66 = vld [vmem:[#allocation6 + $0xa8] sm:$0xff]
    %v67 = vld [vmem:[#allocation6 + $0xb0] sm:$0xff]
    %v68 = vld [vmem:[#allocation6 + $0xb8] sm:$0xff]
    %v69 = vld [vmem:[#allocation6 + $0xc0] sm:$0xff]
    %v70 = vld [vmem:[#allocation6 + $0xc8] sm:$0xff]
    %v71 = vld [vmem:[#allocation6 + $0xd0] sm:$0xff]
    %v72 = vld [vmem:[#allocation6 + $0xd8] sm:$0xff]
    %v73 = vld [vmem:[#allocation6 + $0xe0] sm:$0xff]
    %v74 = vld [vmem:[#allocation6 + $0xe8] sm:$0xff]
    %v75 = vld [vmem:[#allocation6 + $0xf0] sm:$0xff]
    %v76 = vld [vmem:[#allocation6 + $0xf8] sm:$0xff]
    %v77 = vld [vmem:[%s2] sm:$0xf]
    %v79 = vlaneseq
    %v80 = vshrl.u32 %v79, 7
    %v81 = vsub.s32 0, %v80
    %v82 = vrot.slane %v77, %v81
    %v83 = vlaneseq
    %v84 = vshrl.u32 %v83, 7
    %v85 = vsub.s32 1, %v84
    %v86 = vrot.slane %v77, %v85
    %v87 = vlaneseq
    %v88 = vshrl.u32 %v87, 7
    %v89 = vsub.s32 2, %v88
    %v90 = vrot.slane %v77, %v89
    %v91 = vlaneseq
    %v92 = vshrl.u32 %v91, 7
    %v93 = vsub.s32 3, %v92
    %v94 = vrot.slane %v77, %v93
    %vm99 = vcmask 523264
    %v101 = vsel %vm99, %v43, 0
    %v104 = vsel %vm99, %v44, 0
    %106 = vmatprep.subr.mxu0 %v46
    %107 = vmatpush1.msra.mxu0 %v45
    %108 = vmatprep.subr.mxu0 %v50
    %109 = vmatpush1.msra.mxu0 %v49
    %110 = vmatprep.subr.mxu0 %v54
    %111 = vmatpush1.msra.mxu0 %v53
    %112 = vmatprep.subr.mxu0 %v58
    %113 = vmatpush1.msra.mxu0 %v57
    %114 = vmatprep.subr.mxu0 %v62
    %115 = vmatpush1.msra.mxu0 %v61
    %116 = vmatprep.subr.mxu0 %v66
    %117 = vmatpush1.msra.mxu0 %v65
    %118 = vmatprep.subr.mxu0 %v70
    %119 = vmatpush1.msra.mxu0 %v69
    %120 = vmatprep.subr.mxu0 %v74
    %121 = vmatpush1.msra.mxu0 %v73
    %122 = vmatprep.subr.mxu0 0.0
    %123 = vmatpush1.msra.mxu0 0.0
    %124 = vmatprep.subr.mxu0 0.0
    %125 = vmatpush1.msra.mxu0 0.0
    %126 = vmatprep.subr.mxu0 0.0
    %127 = vmatpush1.msra.mxu0 0.0
    %128 = vmatprep.subr.mxu0 0.0
    %129 = vmatpush1.msra.mxu0 0.0
    %130 = vmatprep.subr.mxu0 0.0
    %131 = vmatpush1.msra.mxu0 0.0
    %132 = vmatprep.subr.mxu0 0.0
    %133 = vmatpush1.msra.mxu0 0.0
    %134 = vmatprep.subr.mxu0 0.0
    %135 = vmatpush1.msra.mxu0 0.0
    %136 = vmatprep.subr.mxu0 0.0
    %137 = vmatpush1.msra.mxu0 0.0
    %138 = vmatprep.subr.mxu0 0.0
    %139 = vmatpush1.msra.mxu0 0.0
    %140 = vmatprep.subr.mxu0 0.0
    %141 = vmatpush1.msra.mxu0 0.0
    %142 = vmatprep.subr.mxu0 0.0
    %143 = vmatpush1.msra.mxu0 0.0
    %144 = vmatprep.subr.mxu0 0.0
    %145 = vmatpush1.msra.mxu0 0.0
    %146 = vmatprep.subr.mxu0 0.0
    %147 = vmatpush1.msra.mxu0 0.0
    %148 = vmatprep.subr.mxu0 0.0
    %149 = vmatpush1.msra.mxu0 0.0
    %150 = vmatprep.subr.mxu0 0.0
    %151 = vmatpush1.msra.mxu0 0.0
    %152 = vmatprep.subr.mxu0 0.0
    %153 = vmatpush1.msra.mxu0 0.0
    %154 = vmatprep.subr.mxu0 0.0
    %155 = vmatpush1.msra.mxu0 0.0
    %156 = vmatprep.subr.mxu0 0.0
    %157 = vmatpush1.msra.mxu0 0.0
    %158 = vmatprep.subr.mxu0 0.0
    %159 = vmatpush1.msra.mxu0 0.0
    %160 = vmatprep.subr.mxu0 0.0
    %161 = vmatpush1.msra.mxu0 0.0
    %162 = vmatprep.subr.mxu0 0.0
    %163 = vmatpush1.msra.mxu0 0.0
    %164 = vmatprep.subr.mxu0 0.0
    %165 = vmatpush1.msra.mxu0 0.0
    %166 = vmatprep.subr.mxu0 0.0
    %167 = vmatpush1.msra.mxu0 0.0
    %168 = vmatprep.subr.mxu0 0.0
    %169 = vmatpush1.msra.mxu0 0.0
    %170 = vmatprep.mubr.f32.mxu0 0.0
    %171 = vmatmul.mubr.f32.gmra.mrb[0].mxu0 %v101
    %v172 = vpop.f32.mrb[0].mxu0
    %v173 = vadd.f32 %v82, %v172
    %v174 = vpop.f32.mrb[0].mxu0
    %v175 = vadd.f32 %v86, %v174
    %176 = vmatprep.mubr.f32.mxu0 0.0
    %177 = vmatmul.mubr.f32.gmra.mrb[0].mxu0 %v104
    %v178 = vpop.f32.mrb[0].mxu0
    %v179 = vadd.f32 %v82, %v178
    %v180 = vpop.f32.mrb[0].mxu0
    %v181 = vadd.f32 %v86, %v180
    %182 = vdwg.mxu0
    %183 = vmatprep.subr.mxu0 %v48
    %184 = vmatpush1.msra.mxu0 %v47
    %185 = vmatprep.subr.mxu0 %v52
    %186 = vmatpush1.msra.mxu0 %v51
    %187 = vmatprep.subr.mxu0 %v56
    %188 = vmatpush1.msra.mxu0 %v55
    %189 = vmatprep.subr.mxu0 %v60
    %190 = vmatpush1.msra.mxu0 %v59
    %191 = vmatprep.subr.mxu0 %v64
    %192 = vmatpush1.msra.mxu0 %v63
    %193 = vmatprep.subr.mxu0 %v68
    %194 = vmatpush1.msra.mxu0 %v67
    %195 = vmatprep.subr.mxu0 %v72
    %196 = vmatpush1.msra.mxu0 %v71
    %197 = vmatprep.subr.mxu0 %v76
    %198 = vmatpush1.msra.mxu0 %v75
    %199 = vmatprep.subr.mxu0 0.0
    %200 = vmatpush1.msra.mxu0 0.0
    %201 = vmatprep.subr.mxu0 0.0
    %202 = vmatpush1.msra.mxu0 0.0
    %203 = vmatprep.subr.mxu0 0.0
    %204 = vmatpush1.msra.mxu0 0.0
    %205 = vmatprep.subr.mxu0 0.0
    %206 = vmatpush1.msra.mxu0 0.0
    %207 = vmatprep.subr.mxu0 0.0
    %208 = vmatpush1.msra.mxu0 0.0
    %209 = vmatprep.subr.mxu0 0.0
    %210 = vmatpush1.msra.mxu0 0.0
    %211 = vmatprep.subr.mxu0 0.0
    %212 = vmatpush1.msra.mxu0 0.0
    %213 = vmatprep.subr.mxu0 0.0
    %214 = vmatpush1.msra.mxu0 0.0
    %215 = vmatprep.subr.mxu0 0.0
    %216 = vmatpush1.msra.mxu0 0.0
    %217 = vmatprep.subr.mxu0 0.0
    %218 = vmatpush1.msra.mxu0 0.0
    %219 = vmatprep.subr.mxu0 0.0
    %220 = vmatpush1.msra.mxu0 0.0
    %221 = vmatprep.subr.mxu0 0.0
    %222 = vmatpush1.msra.mxu0 0.0
    %223 = vmatprep.subr.mxu0 0.0
    %224 = vmatpush1.msra.mxu0 0.0
    %225 = vmatprep.subr.mxu0 0.0
    %226 = vmatpush1.msra.mxu0 0.0
    %227 = vmatprep.subr.mxu0 0.0
    %228 = vmatpush1.msra.mxu0 0.0
    %229 = vmatprep.subr.mxu0 0.0
    %230 = vmatpush1.msra.mxu0 0.0
    %231 = vmatprep.subr.mxu0 0.0
    %232 = vmatpush1.msra.mxu0 0.0
    %233 = vmatprep.subr.mxu0 0.0
    %234 = vmatpush1.msra.mxu0 0.0
    %235 = vmatprep.subr.mxu0 0.0
    %236 = vmatpush1.msra.mxu0 0.0
    %237 = vmatprep.subr.mxu0 0.0
    %238 = vmatpush1.msra.mxu0 0.0
    %239 = vmatprep.subr.mxu0 0.0
    %240 = vmatpush1.msra.mxu0 0.0
    %241 = vmatprep.subr.mxu0 0.0
    %242 = vmatpush1.msra.mxu0 0.0
    %243 = vmatprep.subr.mxu0 0.0
    %244 = vmatpush1.msra.mxu0 0.0
    %245 = vmatprep.subr.mxu0 0.0
    %246 = vmatpush1.msra.mxu0 0.0
    %247 = vmatprep.mubr.f32.mxu0 0.0
    %248 = vmatmul.mubr.f32.gmra.mrb[0].mxu0 %v101
    %v249 = vpop.f32.mrb[0].mxu0
    %v250 = vadd.f32 %v90, %v249
    %v251 = vpop.f32.mrb[0].mxu0
    %v252 = vadd.f32 %v94, %v251
    %253 = vmatprep.mubr.f32.mxu0 0.0
    %254 = vmatmul.mubr.f32.gmra.mrb[0].mxu0 %v104
    %v255 = vpop.f32.mrb[0].mxu0
    %v256 = vadd.f32 %v90, %v255
    %v257 = vpop.f32.mrb[0].mxu0
    %v258 = vadd.f32 %v94, %v257
    %259 = vdwg.mxu0
    %260 = vst [vmem:[#allocation2] sm:$0xff] %v173
    %261 = vst [vmem:[#allocation2 + $0x8] sm:$0xff] %v175
    %262 = vst [vmem:[#allocation2 + $0x10] sm:$0xff] %v250
    %263 = vst [vmem:[#allocation2 + $0x18] sm:$0xff] %v252
    %264 = vst [vmem:[#allocation2 + $0x20] sm:$0xff] %v179
    %265 = vst [vmem:[#allocation2 + $0x28] sm:$0xff] %v181
    %266 = vst [vmem:[#allocation2 + $0x30] sm:$0xff] %v256
    %267 = vst [vmem:[#allocation2 + $0x38] sm:$0xff] %v258
    %v268 = vld [vmem:[#allocation2] sm:$0x3]
    %v269 = vld [vmem:[#allocation2 + $0x8] sm:$0x3]
    %v270 = vld [vmem:[#allocation2 + $0x10] sm:$0x3]
    %v271 = vld [vmem:[#allocation2 + $0x18] sm:$0x3]
    %v272 = vld [vmem:[#allocation6 + $0x100] sm:$0xff]
    %v273 = vld [vmem:[#allocation6 + $0x108] sm:$0xff]
    %v274 = vld [vmem:[#allocation6 + $0x110] sm:$0xff]
    %v275 = vld [vmem:[#allocation6 + $0x118] sm:$0xff]
    %v276 = vld [vmem:[#allocation6 + $0x120] sm:$0xff]
    %v277 = vld [vmem:[#allocation6 + $0x128] sm:$0xff]
    %v278 = vld [vmem:[#allocation6 + $0x130] sm:$0xff]
    %v279 = vld [vmem:[#allocation6 + $0x138] sm:$0xff]
    %v280 = vld [vmem:[#allocation6 + $0x140] sm:$0xff]
    %v281 = vld [vmem:[#allocation6 + $0x148] sm:$0xff]
    %v282 = vld [vmem:[#allocation6 + $0x150] sm:$0xff]
    %v283 = vld [vmem:[#allocation6 + $0x158] sm:$0xff]
    %v284 = vld [vmem:[#allocation6 + $0x160] sm:$0xff]
    %v285 = vld [vmem:[#allocation6 + $0x168] sm:$0xff]
    %v286 = vld [vmem:[#allocation6 + $0x170] sm:$0xff]
    %v287 = vld [vmem:[#allocation6 + $0x178] sm:$0xff]
    %v288 = vld [vmem:[#allocation6 + $0x180] sm:$0xff]
    %v289 = vld [vmem:[#allocation6 + $0x188] sm:$0xff]
    %v290 = vld [vmem:[#allocation6 + $0x190] sm:$0xff]
    %v291 = vld [vmem:[#allocation6 + $0x198] sm:$0xff]
    %v292 = vld [vmem:[#allocation6 + $0x1a0] sm:$0xff]
    %v293 = vld [vmem:[#allocation6 + $0x1a8] sm:$0xff]
    %v294 = vld [vmem:[#allocation6 + $0x1b0] sm:$0xff]
    %v295 = vld [vmem:[#allocation6 + $0x1b8] sm:$0xff]
    %v296 = vld [vmem:[#allocation6 + $0x1c0] sm:$0xff]
    %v297 = vld [vmem:[#allocation6 + $0x1c8] sm:$0xff]
    %v298 = vld [vmem:[#allocation6 + $0x1d0] sm:$0xff]
    %v299 = vld [vmem:[#allocation6 + $0x1d8] sm:$0xff]
    %v300 = vld [vmem:[#allocation6 + $0x1e0] sm:$0xff]
    %v301 = vld [vmem:[#allocation6 + $0x1e8] sm:$0xff]
    %v302 = vld [vmem:[#allocation6 + $0x1f0] sm:$0xff]
    %v303 = vld [vmem:[#allocation6 + $0x1f8] sm:$0xff]
    %v304 = vld [vmem:[#allocation6 + $0x200] sm:$0xff]
    %v305 = vld [vmem:[#allocation6 + $0x208] sm:$0xff]
    %v306 = vld [vmem:[#allocation6 + $0x210] sm:$0xff]
    %v307 = vld [vmem:[#allocation6 + $0x218] sm:$0xff]
    %v308 = vld [vmem:[#allocation6 + $0x220] sm:$0xff]
    %v309 = vld [vmem:[#allocation6 + $0x228] sm:$0xff]
    %v310 = vld [vmem:[#allocation6 + $0x230] sm:$0xff]
    %v311 = vld [vmem:[#allocation6 + $0x238] sm:$0xff]
    %v312 = vld [vmem:[#allocation6 + $0x240] sm:$0xff]
    %v313 = vld [vmem:[#allocation6 + $0x248] sm:$0xff]
    %v314 = vld [vmem:[#allocation6 + $0x250] sm:$0xff]
    %v315 = vld [vmem:[#allocation6 + $0x258] sm:$0xff]
    %v316 = vld [vmem:[#allocation6 + $0x260] sm:$0xff]
    %v317 = vld [vmem:[#allocation6 + $0x268] sm:$0xff]
    %v318 = vld [vmem:[#allocation6 + $0x270] sm:$0xff]
    %v319 = vld [vmem:[#allocation6 + $0x278] sm:$0xff]
    %v320 = vld [vmem:[#allocation6 + $0x280] sm:$0xff]
    %v321 = vld [vmem:[#allocation6 + $0x288] sm:$0xff]
    %v322 = vld [vmem:[#allocation6 + $0x290] sm:$0xff]
    %v323 = vld [vmem:[#allocation6 + $0x298] sm:$0xff]
    %v324 = vld [vmem:[#allocation6 + $0x2a0] sm:$0xff]
    %v325 = vld [vmem:[#allocation6 + $0x2a8] sm:$0xff]
    %v326 = vld [vmem:[#allocation6 + $0x2b0] sm:$0xff]
    %v327 = vld [vmem:[#allocation6 + $0x2b8] sm:$0xff]
    %v328 = vld [vmem:[#allocation6 + $0x2c0] sm:$0xff]
    %v329 = vld [vmem:[#allocation6 + $0x2c8] sm:$0xff]
    %v330 = vld [vmem:[#allocation6 + $0x2d0] sm:$0xff]
    %v331 = vld [vmem:[#allocation6 + $0x2d8] sm:$0xff]
    %v332 = vld [vmem:[#allocation6 + $0x2e0] sm:$0xff]
    %v333 = vld [vmem:[#allocation6 + $0x2e8] sm:$0xff]
    %v334 = vld [vmem:[#allocation6 + $0x2f0] sm:$0xff]
    %v335 = vld [vmem:[#allocation6 + $0x2f8] sm:$0xff]
    %336 = vmatprep.subr.mxu0 %v273
    %337 = vmatpush1.msra.mxu0 %v272
    %338 = vmatprep.subr.mxu0 %v277
    %339 = vmatpush1.msra.mxu0 %v276
    %340 = vmatprep.subr.mxu0 %v281
    %341 = vmatpush1.msra.mxu0 %v280
    %342 = vmatprep.subr.mxu0 %v285
    %343 = vmatpush1.msra.mxu0 %v284
    %344 = vmatprep.subr.mxu0 %v289
    %345 = vmatpush1.msra.mxu0 %v288
    %346 = vmatprep.subr.mxu0 %v293
    %347 = vmatpush1.msra.mxu0 %v292
    %348 = vmatprep.subr.mxu0 %v297
    %349 = vmatpush1.msra.mxu0 %v296
    %350 = vmatprep.subr.mxu0 %v301
    %351 = vmatpush1.msra.mxu0 %v300
    %352 = vmatprep.subr.mxu0 %v305
    %353 = vmatpush1.msra.mxu0 %v304
    %354 = vmatprep.subr.mxu0 %v309
    %355 = vmatpush1.msra.mxu0 %v308
    %356 = vmatprep.subr.mxu0 %v313
    %357 = vmatpush1.msra.mxu0 %v312
    %358 = vmatprep.subr.mxu0 %v317
    %359 = vmatpush1.msra.mxu0 %v316
    %360 = vmatprep.subr.mxu0 %v321
    %361 = vmatpush1.msra.mxu0 %v320
    %362 = vmatprep.subr.mxu0 %v325
    %363 = vmatpush1.msra.mxu0 %v324
    %364 = vmatprep.subr.mxu0 %v329
    %365 = vmatpush1.msra.mxu0 %v328
    %366 = vmatprep.subr.mxu0 %v333
    %367 = vmatpush1.msra.mxu0 %v332
    %368 = vmatprep.subr.mxu0 0.0
    %369 = vmatpush1.msra.mxu0 0.0
    %370 = vmatprep.subr.mxu0 0.0
    %371 = vmatpush1.msra.mxu0 0.0
    %372 = vmatprep.subr.mxu0 0.0
    %373 = vmatpush1.msra.mxu0 0.0
    %374 = vmatprep.subr.mxu0 0.0
    %375 = vmatpush1.msra.mxu0 0.0
    %376 = vmatprep.subr.mxu0 0.0
    %377 = vmatpush1.msra.mxu0 0.0
    %378 = vmatprep.subr.mxu0 0.0
    %379 = vmatpush1.msra.mxu0 0.0
    %380 = vmatprep.subr.mxu0 0.0
    %381 = vmatpush1.msra.mxu0 0.0
    %382 = vmatprep.subr.mxu0 0.0
    %383 = vmatpush1.msra.mxu0 0.0
    %384 = vmatprep.subr.mxu0 0.0
    %385 = vmatpush1.msra.mxu0 0.0
    %386 = vmatprep.subr.mxu0 0.0
    %387 = vmatpush1.msra.mxu0 0.0
    %388 = vmatprep.subr.mxu0 0.0
    %389 = vmatpush1.msra.mxu0 0.0
    %390 = vmatprep.subr.mxu0 0.0
    %391 = vmatpush1.msra.mxu0 0.0
    %392 = vmatprep.subr.mxu0 0.0
    %393 = vmatpush1.msra.mxu0 0.0
    %394 = vmatprep.subr.mxu0 0.0
    %395 = vmatpush1.msra.mxu0 0.0
    %396 = vmatprep.subr.mxu0 0.0
    %397 = vmatpush1.msra.mxu0 0.0
    %398 = vmatprep.subr.mxu0 0.0
    %399 = vmatpush1.msra.mxu0 0.0
    %400 = vmatprep.mubr.f32.mxu0 0.0
    %401 = vmatmul.mubr.f32.gmra.mrb[0].mxu0 0.0
    %v402 = vpop.f32.mrb[0].mxu0
    %v403 = vadd.f32 0.0, %v402
    %v404 = vpop.f32.mrb[0].mxu0
    %v405 = vadd.f32 0.0, %v404
    %406 = vdwg.mxu0
    %407 = vmatprep.subr.mxu0 %v275
    %408 = vmatpush1.msra.mxu0 %v274
    %409 = vmatprep.subr.mxu0 %v279
    %410 = vmatpush1.msra.mxu0 %v278
    %411 = vmatprep.subr.mxu0 %v283
    %412 = vmatpush1.msra.mxu0 %v282
    %413 = vmatprep.subr.mxu0 %v287
    %414 = vmatpush1.msra.mxu0 %v286
    %415 = vmatprep.subr.mxu0 %v291
    %416 = vmatpush1.msra.mxu0 %v290
    %417 = vmatprep.subr.mxu0 %v295
    %418 = vmatpush1.msra.mxu0 %v294
    %419 = vmatprep.subr.mxu0 %v299
    %420 = vmatpush1.msra.mxu0 %v298
    %421 = vmatprep.subr.mxu0 %v303
    %422 = vmatpush1.msra.mxu0 %v302
    %423 = vmatprep.subr.mxu0 %v307
    %424 = vmatpush1.msra.mxu0 %v306
    %425 = vmatprep.subr.mxu0 %v311
    %426 = vmatpush1.msra.mxu0 %v310
    %427 = vmatprep.subr.mxu0 %v315
    %428 = vmatpush1.msra.mxu0 %v314
    %429 = vmatprep.subr.mxu0 %v319
    %430 = vmatpush1.msra.mxu0 %v318
    %431 = vmatprep.subr.mxu0 %v323
    %432 = vmatpush1.msra.mxu0 %v322
    %433 = vmatprep.subr.mxu0 %v327
    %434 = vmatpush1.msra.mxu0 %v326
    %435 = vmatprep.subr.mxu0 %v331
    %436 = vmatpush1.msra.mxu0 %v330
    %437 = vmatprep.subr.mxu0 %v335
    %438 = vmatpush1.msra.mxu0 %v334
    %439 = vmatprep.subr.mxu0 0.0
    %440 = vmatpush1.msra.mxu0 0.0
    %441 = vmatprep.subr.mxu0 0.0
    %442 = vmatpush1.msra.mxu0 0.0
    %443 = vmatprep.subr.mxu0 0.0
    %444 = vmatpush1.msra.mxu0 0.0
    %445 = vmatprep.subr.mxu0 0.0
    %446 = vmatpush1.msra.mxu0 0.0
    %447 = vmatprep.subr.mxu0 0.0
    %448 = vmatpush1.msra.mxu0 0.0
    %449 = vmatprep.subr.mxu0 0.0
    %450 = vmatpush1.msra.mxu0 0.0
    %451 = vmatprep.subr.mxu0 0.0
    %452 = vmatpush1.msra.mxu0 0.0
    %453 = vmatprep.subr.mxu0 0.0
    %454 = vmatpush1.msra.mxu0 0.0
    %455 = vmatprep.subr.mxu0 0.0
    %456 = vmatpush1.msra.mxu0 0.0
    %457 = vmatprep.subr.mxu0 0.0
    %458 = vmatpush1.msra.mxu0 0.0
    %459 = vmatprep.subr.mxu0 0.0
    %460 = vmatpush1.msra.mxu0 0.0
    %461 = vmatprep.subr.mxu0 0.0
    %462 = vmatpush1.msra.mxu0 0.0
    %463 = vmatprep.subr.mxu0 0.0
    %464 = vmatpush1.msra.mxu0 0.0
    %465 = vmatprep.subr.mxu0 0.0
    %466 = vmatpush1.msra.mxu0 0.0
    %467 = vmatprep.subr.mxu0 0.0
    %468 = vmatpush1.msra.mxu0 0.0
    %469 = vmatprep.subr.mxu0 0.0
    %470 = vmatpush1.msra.mxu0 0.0
    %471 = vmatprep.mubr.f32.mxu0 0.0
    %472 = vmatmul.mubr.f32.gmra.mrb[0].mxu0 0.0
    %v473 = vpop.f32.mrb[0].mxu0
    %v474 = vadd.f32 0.0, %v473
    %v475 = vpop.f32.mrb[0].mxu0
    %v476 = vadd.f32 0.0, %v475
    %477 = vdwg.mxu0
    %v478 = vadd.f32 %v268, %v403
    %v479 = vadd.f32 %v269, %v405
    %v480 = vadd.f32 %v270, %v474
    %v481 = vadd.f32 %v271, %v476
    %v482 = vxor.u32 %v478, 2147483648
    %v483 = vxor.u32 %v479, 2147483648
    %v484 = vxor.u32 %v481, 2147483648
    %v485 = vmul.f32 %v482, 1.442695
    %v486 = vpow.pop %v485
    %v487 = vmul.f32 %v483, 1.442695
    %v488 = vpow.pop %v487
    %v489 = vmul.f32 %v484, 1.442695
    %v490 = vpow.pop %v489
    %v491 = vadd.f32 %v486, 1.0
    %v492 = vadd.f32 %v488, 1.0
    %v493 = vadd.f32 %v490, 1.0
    %v494 = vrcp.pop %v491
    %v495 = vmul.f32 1.0, %v494
    %v496 = vrcp.pop %v492
    %v497 = vmul.f32 1.0, %v496
    %v498 = vrcp.pop %v493
    %v499 = vmul.f32 1.0, %v498
    %v500 = vtanh.pop %v480
    %v501 = vmul.f32 %v497, 0.0
    %v502 = vmul.f32 %v495, %v500
    %v503 = vadd.f32 %v501, %v502
    %v504 = vtanh.pop %v503
    %v505 = vmul.f32 %v499, %v504
    %506 = vst [vmem:[#allocation8] sm:$0x3] %v505
    %v507 = vld [vmem:[#allocation2] sm:$0xc]
    %v508 = vld [vmem:[#allocation2 + $0x8] sm:$0xc]
    %v509 = vld [vmem:[#allocation2 + $0x10] sm:$0xc]
    %v510 = vld [vmem:[#allocation2 + $0x18] sm:$0xc]
    %v511 = vld [vmem:[#allocation6 + $0x100] sm:$0xff]
    %v512 = vld [vmem:[#allocation6 + $0x108] sm:$0xff]
    %v513 = vld [vmem:[#allocation6 + $0x110] sm:$0xff]
    %v514 = vld [vmem:[#allocation6 + $0x118] sm:$0xff]
    %v515 = vld [vmem:[#allocation6 + $0x120] sm:$0xff]
    %v516 = vld [vmem:[#allocation6 + $0x128] sm:$0xff]
    %v517 = vld [vmem:[#allocation6 + $0x130] sm:$0xff]
    %v518 = vld [vmem:[#allocation6 + $0x138] sm:$0xff]
    %v519 = vld [vmem:[#allocation6 + $0x140] sm:$0xff]
    %v520 = vld [vmem:[#allocation6 + $0x148] sm:$0xff]
    %v521 = vld [vmem:[#allocation6 + $0x150] sm:$0xff]
    %v522 = vld [vmem:[#allocation6 + $0x158] sm:$0xff]
    %v523 = vld [vmem:[#allocation6 + $0x160] sm:$0xff]
    %v524 = vld [vmem:[#allocation6 + $0x168] sm:$0xff]
    %v525 = vld [vmem:[#allocation6 + $0x170] sm:$0xff]
    %v526 = vld [vmem:[#allocation6 + $0x178] sm:$0xff]
    %v527 = vld [vmem:[#allocation6 + $0x180] sm:$0xff]
    %v528 = vld [vmem:[#allocation6 + $0x188] sm:$0xff]
    %v529 = vld [vmem:[#allocation6 + $0x190] sm:$0xff]
    %v530 = vld [vmem:[#allocation6 + $0x198] sm:$0xff]
    %v531 = vld [vmem:[#allocation6 + $0x1a0] sm:$0xff]
    %v532 = vld [vmem:[#allocation6 + $0x1a8] sm:$0xff]
    %v533 = vld [vmem:[#allocation6 + $0x1b0] sm:$0xff]
    %v534 = vld [vmem:[#allocation6 + $0x1b8] sm:$0xff]
    %v535 = vld [vmem:[#allocation6 + $0x1c0] sm:$0xff]
    %v536 = vld [vmem:[#allocation6 + $0x1c8] sm:$0xff]
    %v537 = vld [vmem:[#allocation6 + $0x1d0] sm:$0xff]
    %v538 = vld [vmem:[#allocation6 + $0x1d8] sm:$0xff]
    %v539 = vld [vmem:[#allocation6 + $0x1e0] sm:$0xff]
    %v540 = vld [vmem:[#allocation6 + $0x1e8] sm:$0xff]
    %v541 = vld [vmem:[#allocation6 + $0x1f0] sm:$0xff]
    %v542 = vld [vmem:[#allocation6 + $0x1f8] sm:$0xff]
    %v543 = vld [vmem:[#allocation6 + $0x200] sm:$0xff]
    %v544 = vld [vmem:[#allocation6 + $0x208] sm:$0xff]
    %v545 = vld [vmem:[#allocation6 + $0x210] sm:$0xff]
    %v546 = vld [vmem:[#allocation6 + $0x218] sm:$0xff]
    %v547 = vld [vmem:[#allocation6 + $0x220] sm:$0xff]
    %v548 = vld [vmem:[#allocation6 + $0x228] sm:$0xff]
    %v549 = vld [vmem:[#allocation6 + $0x230] sm:$0xff]
    %v550 = vld [vmem:[#allocation6 + $0x238] sm:$0xff]
    %v551 = vld [vmem:[#allocation6 + $0x240] sm:$0xff]
    %v552 = vld [vmem:[#allocation6 + $0x248] sm:$0xff]
    %v553 = vld [vmem:[#allocation6 + $0x250] sm:$0xff]
    %v554 = vld [vmem:[#allocation6 + $0x258] sm:$0xff]
    %v555 = vld [vmem:[#allocation6 + $0x260] sm:$0xff]
    %v556 = vld [vmem:[#allocation6 + $0x268] sm:$0xff]
    %v557 = vld [vmem:[#allocation6 + $0x270] sm:$0xff]
    %v558 = vld [vmem:[#allocation6 + $0x278] sm:$0xff]
    %v559 = vld [vmem:[#allocation6 + $0x280] sm:$0xff]
    %v560 = vld [vmem:[#allocation6 + $0x288] sm:$0xff]
    %v561 = vld [vmem:[#allocation6 + $0x290] sm:$0xff]
    %v562 = vld [vmem:[#allocation6 + $0x298] sm:$0xff]
    %v563 = vld [vmem:[#allocation6 + $0x2a0] sm:$0xff]
    %v564 = vld [vmem:[#allocation6 + $0x2a8] sm:$0xff]
    %v565 = vld [vmem:[#allocation6 + $0x2b0] sm:$0xff]
    %v566 = vld [vmem:[#allocation6 + $0x2b8] sm:$0xff]
    %v567 = vld [vmem:[#allocation6 + $0x2c0] sm:$0xff]
    %v568 = vld [vmem:[#allocation6 + $0x2c8] sm:$0xff]
    %v569 = vld [vmem:[#allocation6 + $0x2d0] sm:$0xff]
    %v570 = vld [vmem:[#allocation6 + $0x2d8] sm:$0xff]
    %v571 = vld [vmem:[#allocation6 + $0x2e0] sm:$0xff]
    %v572 = vld [vmem:[#allocation6 + $0x2e8] sm:$0xff]
    %v573 = vld [vmem:[#allocation6 + $0x2f0] sm:$0xff]
    %v574 = vld [vmem:[#allocation6 + $0x2f8] sm:$0xff]
    %575 = vmatprep.subr.mxu0 %v512
    %576 = vmatpush1.msra.mxu0 %v511
    %577 = vmatprep.subr.mxu0 %v516
    %578 = vmatpush1.msra.mxu0 %v515
    %579 = vmatprep.subr.mxu0 %v520
    %580 = vmatpush1.msra.mxu0 %v519
    %581 = vmatprep.subr.mxu0 %v524
    %582 = vmatpush1.msra.mxu0 %v523
    %583 = vmatprep.subr.mxu0 %v528
    %584 = vmatpush1.msra.mxu0 %v527
    %585 = vmatprep.subr.mxu0 %v532
    %586 = vmatpush1.msra.mxu0 %v531
    %587 = vmatprep.subr.mxu0 %v536
    %588 = vmatpush1.msra.mxu0 %v535
    %589 = vmatprep.subr.mxu0 %v540
    %590 = vmatpush1.msra.mxu0 %v539
    %591 = vmatprep.subr.mxu0 %v544
    %592 = vmatpush1.msra.mxu0 %v543
    %593 = vmatprep.subr.mxu0 %v548
    %594 = vmatpush1.msra.mxu0 %v547
    %595 = vmatprep.subr.mxu0 %v552
    %596 = vmatpush1.msra.mxu0 %v551
    %597 = vmatprep.subr.mxu0 %v556
    %598 = vmatpush1.msra.mxu0 %v555
    %599 = vmatprep.subr.mxu0 %v560
    %600 = vmatpush1.msra.mxu0 %v559
    %601 = vmatprep.subr.mxu0 %v564
    %602 = vmatpush1.msra.mxu0 %v563
    %603 = vmatprep.subr.mxu0 %v568
    %604 = vmatpush1.msra.mxu0 %v567
    %605 = vmatprep.subr.mxu0 %v572
    %606 = vmatpush1.msra.mxu0 %v571
    %607 = vmatprep.subr.mxu0 0.0
    %608 = vmatpush1.msra.mxu0 0.0
    %609 = vmatprep.subr.mxu0 0.0
    %610 = vmatpush1.msra.mxu0 0.0
    %611 = vmatprep.subr.mxu0 0.0
    %612 = vmatpush1.msra.mxu0 0.0
    %613 = vmatprep.subr.mxu0 0.0
    %614 = vmatpush1.msra.mxu0 0.0
    %615 = vmatprep.subr.mxu0 0.0
    %616 = vmatpush1.msra.mxu0 0.0
    %617 = vmatprep.subr.mxu0 0.0
    %618 = vmatpush1.msra.mxu0 0.0
    %619 = vmatprep.subr.mxu0 0.0
    %620 = vmatpush1.msra.mxu0 0.0
    %621 = vmatprep.subr.mxu0 0.0
    %622 = vmatpush1.msra.mxu0 0.0
    %623 = vmatprep.subr.mxu0 0.0
    %624 = vmatpush1.msra.mxu0 0.0
    %625 = vmatprep.subr.mxu0 0.0
    %626 = vmatpush1.msra.mxu0 0.0
    %627 = vmatprep.subr.mxu0 0.0
    %628 = vmatpush1.msra.mxu0 0.0
    %629 = vmatprep.subr.mxu0 0.0
    %630 = vmatpush1.msra.mxu0 0.0
    %631 = vmatprep.subr.mxu0 0.0
    %632 = vmatpush1.msra.mxu0 0.0
    %633 = vmatprep.subr.mxu0 0.0
    %634 = vmatpush1.msra.mxu0 0.0
    %635 = vmatprep.subr.mxu0 0.0
    %636 = vmatpush1.msra.mxu0 0.0
    %637 = vmatprep.subr.mxu0 0.0
    %638 = vmatpush1.msra.mxu0 0.0
    %639 = vmatprep.mubr.f32.mxu0 0.0
    %640 = vmatmul.mubr.f32.gmra.mrb[0].mxu0 %v505
    %v641 = vpop.f32.mrb[0].mxu0
    %v642 = vadd.f32 0.0, %v641
    %v643 = vpop.f32.mrb[0].mxu0
    %v644 = vadd.f32 0.0, %v643
    %645 = vdwg.mxu0
    %646 = vmatprep.subr.mxu0 %v514
    %647 = vmatpush1.msra.mxu0 %v513
    %648 = vmatprep.subr.mxu0 %v518
    %649 = vmatpush1.msra.mxu0 %v517
    %650 = vmatprep.subr.mxu0 %v522
    %651 = vmatpush1.msra.mxu0 %v521
    %652 = vmatprep.subr.mxu0 %v526
    %653 = vmatpush1.msra.mxu0 %v525
    %654 = vmatprep.subr.mxu0 %v530
    %655 = vmatpush1.msra.mxu0 %v529
    %656 = vmatprep.subr.mxu0 %v534
    %657 = vmatpush1.msra.mxu0 %v533
    %658 = vmatprep.subr.mxu0 %v538
    %659 = vmatpush1.msra.mxu0 %v537
    %660 = vmatprep.subr.mxu0 %v542
    %661 = vmatpush1.msra.mxu0 %v541
    %662 = vmatprep.subr.mxu0 %v546
    %663 = vmatpush1.msra.mxu0 %v545
    %664 = vmatprep.subr.mxu0 %v550
    %665 = vmatpush1.msra.mxu0 %v549
    %666 = vmatprep.subr.mxu0 %v554
    %667 = vmatpush1.msra.mxu0 %v553
    %668 = vmatprep.subr.mxu0 %v558
    %669 = vmatpush1.msra.mxu0 %v557
    %670 = vmatprep.subr.mxu0 %v562
    %671 = vmatpush1.msra.mxu0 %v561
    %672 = vmatprep.subr.mxu0 %v566
    %673 = vmatpush1.msra.mxu0 %v565
    %674 = vmatprep.subr.mxu0 %v570
    %675 = vmatpush1.msra.mxu0 %v569
    %676 = vmatprep.subr.mxu0 %v574
    %677 = vmatpush1.msra.mxu0 %v573
    %678 = vmatprep.subr.mxu0 0.0
    %679 = vmatpush1.msra.mxu0 0.0
    %680 = vmatprep.subr.mxu0 0.0
    %681 = vmatpush1.msra.mxu0 0.0
    %682 = vmatprep.subr.mxu0 0.0
    %683 = vmatpush1.msra.mxu0 0.0
    %684 = vmatprep.subr.mxu0 0.0
    %685 = vmatpush1.msra.mxu0 0.0
    %686 = vmatprep.subr.mxu0 0.0
    %687 = vmatpush1.msra.mxu0 0.0
    %688 = vmatprep.subr.mxu0 0.0
    %689 = vmatpush1.msra.mxu0 0.0
    %690 = vmatprep.subr.mxu0 0.0
    %691 = vmatpush1.msra.mxu0 0.0
    %692 = vmatprep.subr.mxu0 0.0
    %693 = vmatpush1.msra.mxu0 0.0
    %694 = vmatprep.subr.mxu0 0.0
    %695 = vmatpush1.msra.mxu0 0.0
    %696 = vmatprep.subr.mxu0 0.0
    %697 = vmatpush1.msra.mxu0 0.0
    %698 = vmatprep.subr.mxu0 0.0
    %699 = vmatpush1.msra.mxu0 0.0
    %700 = vmatprep.subr.mxu0 0.0
    %701 = vmatpush1.msra.mxu0 0.0
    %702 = vmatprep.subr.mxu0 0.0
    %703 = vmatpush1.msra.mxu0 0.0
    %704 = vmatprep.subr.mxu0 0.0
    %705 = vmatpush1.msra.mxu0 0.0
    %706 = vmatprep.subr.mxu0 0.0
    %707 = vmatpush1.msra.mxu0 0.0
    %708 = vmatprep.subr.mxu0 0.0
    %709 = vmatpush1.msra.mxu0 0.0
    %710 = vmatprep.mubr.f32.mxu0 0.0
    %711 = vmatmul.mubr.f32.gmra.mrb[0].mxu0 %v505
    %v712 = vpop.f32.mrb[0].mxu0
    %v713 = vadd.f32 0.0, %v712
    %v714 = vpop.f32.mrb[0].mxu0
    %v715 = vadd.f32 0.0, %v714
    %716 = vdwg.mxu0
    %v721 = vrot.slane %v642, 6
    %v722 = vrot.slane %v644, 6
    %v723 = vrot.slane %v713, 6
    %v724 = vrot.slane %v715, 6
    %v729 = vadd.f32 %v507, %v721
    %v730 = vadd.f32 %v508, %v722
    %v731 = vadd.f32 %v509, %v723
    %v732 = vadd.f32 %v510, %v724
    %v733 = vxor.u32 %v729, 2147483648
    %v734 = vxor.u32 %v730, 2147483648
    %v735 = vxor.u32 %v732, 2147483648
    %v736 = vmul.f32 %v733, 1.442695
    %v737 = vpow.pop %v736
    %v738 = vmul.f32 %v734, 1.442695
    %v739 = vpow.pop %v738
    %v740 = vmul.f32 %v735, 1.442695
    %v741 = vpow.pop %v740
    %v742 = vadd.f32 %v737, 1.0
    %v743 = vadd.f32 %v739, 1.0
    %v744 = vadd.f32 %v741, 1.0
    %v745 = vrcp.pop %v742
    %v746 = vmul.f32 1.0, %v745
    %v747 = vrcp.pop %v743
    %v748 = vmul.f32 1.0, %v747
    %v749 = vrcp.pop %v744
    %v750 = vmul.f32 1.0, %v749
    %v751 = vtanh.pop %v731
    %v753 = vrot.slane %v503, 6
    %v755 = vmul.f32 %v748, %v753
    %v756 = vmul.f32 %v746, %v751
    %v757 = vadd.f32 %v755, %v756
    %v758 = vtanh.pop %v757
    %v759 = vmul.f32 %v750, %v758
    %s760 = scalar_lea.vmem [#allocation8], 2
    %761 = vst [vmem:[%s760 - $0x2] sm:$0xc] %v759
    %v762 = vld [vmem:[#allocation2] sm:$0x30]
    %v763 = vld [vmem:[#allocation2 + $0x8] sm:$0x30]
    %v764 = vld [vmem:[#allocation2 + $0x10] sm:$0x30]
    %v765 = vld [vmem:[#allocation2 + $0x18] sm:$0x30]
    %v766 = vld [vmem:[#allocation6 + $0x100] sm:$0xff]
    %v767 = vld [vmem:[#allocation6 + $0x108] sm:$0xff]
    %v768 = vld [vmem:[#allocation6 + $0x110] sm:$0xff]
    %v769 = vld [vmem:[#allocation6 + $0x118] sm:$0xff]
    %v770 = vld [vmem:[#allocation6 + $0x120] sm:$0xff]
    %v771 = vld [vmem:[#allocation6 + $0x128] sm:$0xff]
    %v772 = vld [vmem:[#allocation6 + $0x130] sm:$0xff]
    %v773 = vld [vmem:[#allocation6 + $0x138] sm:$0xff]
    %v774 = vld [vmem:[#allocation6 + $0x140] sm:$0xff]
    %v775 = vld [vmem:[#allocation6 + $0x148] sm:$0xff]
    %v776 = vld [vmem:[#allocation6 + $0x150] sm:$0xff]
    %v777 = vld [vmem:[#allocation6 + $0x158] sm:$0xff]
    %v778 = vld [vmem:[#allocation6 + $0x160] sm:$0xff]
    %v779 = vld [vmem:[#allocation6 + $0x168] sm:$0xff]
    %v780 = vld [vmem:[#allocation6 + $0x170] sm:$0xff]
    %v781 = vld [vmem:[#allocation6 + $0x178] sm:$0xff]
    %v782 = vld [vmem:[#allocation6 + $0x180] sm:$0xff]
    %v783 = vld [vmem:[#allocation6 + $0x188] sm:$0xff]
    %v784 = vld [vmem:[#allocation6 + $0x190] sm:$0xff]
    %v785 = vld [vmem:[#allocation6 + $0x198] sm:$0xff]
    %v786 = vld [vmem:[#allocation6 + $0x1a0] sm:$0xff]
    %v787 = vld [vmem:[#allocation6 + $0x1a8] sm:$0xff]
    %v788 = vld [vmem:[#allocation6 + $0x1b0] sm:$0xff]
    %v789 = vld [vmem:[#allocation6 + $0x1b8] sm:$0xff]
    %v790 = vld [vmem:[#allocation6 + $0x1c0] sm:$0xff]
    %v791 = vld [vmem:[#allocation6 + $0x1c8] sm:$0xff]
    %v792 = vld [vmem:[#allocation6 + $0x1d0] sm:$0xff]
    %v793 = vld [vmem:[#allocation6 + $0x1d8] sm:$0xff]
    %v794 = vld [vmem:[#allocation6 + $0x1e0] sm:$0xff]
    %v795 = vld [vmem:[#allocation6 + $0x1e8] sm:$0xff]
    %v796 = vld [vmem:[#allocation6 + $0x1f0] sm:$0xff]
    %v797 = vld [vmem:[#allocation6 + $0x1f8] sm:$0xff]
    %v798 = vld [vmem:[#allocation6 + $0x200] sm:$0xff]
    %v799 = vld [vmem:[#allocation6 + $0x208] sm:$0xff]
    %v800 = vld [vmem:[#allocation6 + $0x210] sm:$0xff]
    %v801 = vld [vmem:[#allocation6 + $0x218] sm:$0xff]
    %v802 = vld [vmem:[#allocation6 + $0x220] sm:$0xff]
    %v803 = vld [vmem:[#allocation6 + $0x228] sm:$0xff]
    %v804 = vld [vmem:[#allocation6 + $0x230] sm:$0xff]
    %v805 = vld [vmem:[#allocation6 + $0x238] sm:$0xff]
    %v806 = vld [vmem:[#allocation6 + $0x240] sm:$0xff]
    %v807 = vld [vmem:[#allocation6 + $0x248] sm:$0xff]
    %v808 = vld [vmem:[#allocation6 + $0x250] sm:$0xff]
    %v809 = vld [vmem:[#allocation6 + $0x258] sm:$0xff]
    %v810 = vld [vmem:[#allocation6 + $0x260] sm:$0xff]
    %v811 = vld [vmem:[#allocation6 + $0x268] sm:$0xff]
    %v812 = vld [vmem:[#allocation6 + $0x270] sm:$0xff]
    %v813 = vld [vmem:[#allocation6 + $0x278] sm:$0xff]
    %v814 = vld [vmem:[#allocation6 + $0x280] sm:$0xff]
    %v815 = vld [vmem:[#allocation6 + $0x288] sm:$0xff]
    %v816 = vld [vmem:[#allocation6 + $0x290] sm:$0xff]
    %v817 = vld [vmem:[#allocation6 + $0x298] sm:$0xff]
    %v818 = vld [vmem:[#allocation6 + $0x2a0] sm:$0xff]
    %v819 = vld [vmem:[#allocation6 + $0x2a8] sm:$0xff]
    %v820 = vld [vmem:[#allocation6 + $0x2b0] sm:$0xff]
    %v821 = vld [vmem:[#allocation6 + $0x2b8] sm:$0xff]
    %v822 = vld [vmem:[#allocation6 + $0x2c0] sm:$0xff]
    %v823 = vld [vmem:[#allocation6 + $0x2c8] sm:$0xff]
    %v824 = vld [vmem:[#allocation6 + $0x2d0] sm:$0xff]
    %v825 = vld [vmem:[#allocation6 + $0x2d8] sm:$0xff]
    %v826 = vld [vmem:[#allocation6 + $0x2e0] sm:$0xff]
    %v827 = vld [vmem:[#allocation6 + $0x2e8] sm:$0xff]
    %v828 = vld [vmem:[#allocation6 + $0x2f0] sm:$0xff]
    %v829 = vld [vmem:[#allocation6 + $0x2f8] sm:$0xff]
    %v831 = vrot.slane %v759, 2
    %833 = vmatprep.subr.mxu0 %v767
    %834 = vmatpush1.msra.mxu0 %v766
    %835 = vmatprep.subr.mxu0 %v771
    %836 = vmatpush1.msra.mxu0 %v770
    %837 = vmatprep.subr.mxu0 %v775
    %838 = vmatpush1.msra.mxu0 %v774
    %839 = vmatprep.subr.mxu0 %v779
    %840 = vmatpush1.msra.mxu0 %v778
    %841 = vmatprep.subr.mxu0 %v783
    %842 = vmatpush1.msra.mxu0 %v782
    %843 = vmatprep.subr.mxu0 %v787
    %844 = vmatpush1.msra.mxu0 %v786
    %845 = vmatprep.subr.mxu0 %v791
    %846 = vmatpush1.msra.mxu0 %v790
    %847 = vmatprep.subr.mxu0 %v795
    %848 = vmatpush1.msra.mxu0 %v794
    %849 = vmatprep.subr.mxu0 %v799
    %850 = vmatpush1.msra.mxu0 %v798
    %851 = vmatprep.subr.mxu0 %v803
    %852 = vmatpush1.msra.mxu0 %v802
    %853 = vmatprep.subr.mxu0 %v807
    %854 = vmatpush1.msra.mxu0 %v806
    %855 = vmatprep.subr.mxu0 %v811
    %856 = vmatpush1.msra.mxu0 %v810
    %857 = vmatprep.subr.mxu0 %v815
    %858 = vmatpush1.msra.mxu0 %v814
    %859 = vmatprep.subr.mxu0 %v819
    %860 = vmatpush1.msra.mxu0 %v818
    %861 = vmatprep.subr.mxu0 %v823
    %862 = vmatpush1.msra.mxu0 %v822
    %863 = vmatprep.subr.mxu0 %v827
    %864 = vmatpush1.msra.mxu0 %v826
    %865 = vmatprep.subr.mxu0 0.0
    %866 = vmatpush1.msra.mxu0 0.0
    %867 = vmatprep.subr.mxu0 0.0
    %868 = vmatpush1.msra.mxu0 0.0
    %869 = vmatprep.subr.mxu0 0.0
    %870 = vmatpush1.msra.mxu0 0.0
    %871 = vmatprep.subr.mxu0 0.0
    %872 = vmatpush1.msra.mxu0 0.0
    %873 = vmatprep.subr.mxu0 0.0
    %874 = vmatpush1.msra.mxu0 0.0
    %875 = vmatprep.subr.mxu0 0.0
    %876 = vmatpush1.msra.mxu0 0.0
    %877 = vmatprep.subr.mxu0 0.0
    %878 = vmatpush1.msra.mxu0 0.0
    %879 = vmatprep.subr.mxu0 0.0
    %880 = vmatpush1.msra.mxu0 0.0
    %881 = vmatprep.subr.mxu0 0.0
    %882 = vmatpush1.msra.mxu0 0.0
    %883 = vmatprep.subr.mxu0 0.0
    %884 = vmatpush1.msra.mxu0 0.0
    %885 = vmatprep.subr.mxu0 0.0
    %886 = vmatpush1.msra.mxu0 0.0
    %887 = vmatprep.subr.mxu0 0.0
    %888 = vmatpush1.msra.mxu0 0.0
    %889 = vmatprep.subr.mxu0 0.0
    %890 = vmatpush1.msra.mxu0 0.0
    %891 = vmatprep.subr.mxu0 0.0
    %892 = vmatpush1.msra.mxu0 0.0
    %893 = vmatprep.subr.mxu0 0.0
    %894 = vmatpush1.msra.mxu0 0.0
    %895 = vmatprep.subr.mxu0 0.0
    %896 = vmatpush1.msra.mxu0 0.0
    %897 = vmatprep.mubr.f32.mxu0 0.0
    %898 = vmatmul.mubr.f32.gmra.mrb[0].mxu0 %v831
    %v899 = vpop.f32.mrb[0].mxu0
    %v900 = vadd.f32 0.0, %v899
    %v901 = vpop.f32.mrb[0].mxu0
    %v902 = vadd.f32 0.0, %v901
    %903 = vdwg.mxu0
    %904 = vmatprep.subr.mxu0 %v769
    %905 = vmatpush1.msra.mxu0 %v768
    %906 = vmatprep.subr.mxu0 %v773
    %907 = vmatpush1.msra.mxu0 %v772
    %908 = vmatprep.subr.mxu0 %v777
    %909 = vmatpush1.msra.mxu0 %v776
    %910 = vmatprep.subr.mxu0 %v781
    %911 = vmatpush1.msra.mxu0 %v780
    %912 = vmatprep.subr.mxu0 %v785
    %913 = vmatpush1.msra.mxu0 %v784
    %914 = vmatprep.subr.mxu0 %v789
    %915 = vmatpush1.msra.mxu0 %v788
    %916 = vmatprep.subr.mxu0 %v793
    %917 = vmatpush1.msra.mxu0 %v792
    %918 = vmatprep.subr.mxu0 %v797
    %919 = vmatpush1.msra.mxu0 %v796
    %920 = vmatprep.subr.mxu0 %v801
    %921 = vmatpush1.msra.mxu0 %v800
    %922 = vmatprep.subr.mxu0 %v805
    %923 = vmatpush1.msra.mxu0 %v804
    %924 = vmatprep.subr.mxu0 %v809
    %925 = vmatpush1.msra.mxu0 %v808
    %926 = vmatprep.subr.mxu0 %v813
    %927 = vmatpush1.msra.mxu0 %v812
    %928 = vmatprep.subr.mxu0 %v817
    %929 = vmatpush1.msra.mxu0 %v816
    %930 = vmatprep.subr.mxu0 %v821
    %931 = vmatpush1.msra.mxu0 %v820
    %932 = vmatprep.subr.mxu0 %v825
    %933 = vmatpush1.msra.mxu0 %v824
    %934 = vmatprep.subr.mxu0 %v829
    %935 = vmatpush1.msra.mxu0 %v828
    %936 = vmatprep.subr.mxu0 0.0
    %937 = vmatpush1.msra.mxu0 0.0
    %938 = vmatprep.subr.mxu0 0.0
    %939 = vmatpush1.msra.mxu0 0.0
    %940 = vmatprep.subr.mxu0 0.0
    %941 = vmatpush1.msra.mxu0 0.0
    %942 = vmatprep.subr.mxu0 0.0
    %943 = vmatpush1.msra.mxu0 0.0
    %944 = vmatprep.subr.mxu0 0.0
    %945 = vmatpush1.msra.mxu0 0.0
    %946 = vmatprep.subr.mxu0 0.0
    %947 = vmatpush1.msra.mxu0 0.0
    %948 = vmatprep.subr.mxu0 0.0
    %949 = vmatpush1.msra.mxu0 0.0
    %950 = vmatprep.subr.mxu0 0.0
    %951 = vmatpush1.msra.mxu0 0.0
    %952 = vmatprep.subr.mxu0 0.0
    %953 = vmatpush1.msra.mxu0 0.0
    %954 = vmatprep.subr.mxu0 0.0
    %955 = vmatpush1.msra.mxu0 0.0
    %956 = vmatprep.subr.mxu0 0.0
    %957 = vmatpush1.msra.mxu0 0.0
    %958 = vmatprep.subr.mxu0 0.0
    %959 = vmatpush1.msra.mxu0 0.0
    %960 = vmatprep.subr.mxu0 0.0
    %961 = vmatpush1.msra.mxu0 0.0
    %962 = vmatprep.subr.mxu0 0.0
    %963 = vmatpush1.msra.mxu0 0.0
    %964 = vmatprep.subr.mxu0 0.0
    %965 = vmatpush1.msra.mxu0 0.0
    %966 = vmatprep.subr.mxu0 0.0
    %967 = vmatpush1.msra.mxu0 0.0
    %968 = vmatprep.mubr.f32.mxu0 0.0
    %969 = vmatmul.mubr.f32.gmra.mrb[0].mxu0 %v831
    %v970 = vpop.f32.mrb[0].mxu0
    %v971 = vadd.f32 0.0, %v970
    %v972 = vpop.f32.mrb[0].mxu0
    %v973 = vadd.f32 0.0, %v972
    %974 = vdwg.mxu0
    %v979 = vrot.slane %v900, 4
    %v980 = vrot.slane %v902, 4
    %v981 = vrot.slane %v971, 4
    %v982 = vrot.slane %v973, 4
    %v987 = vadd.f32 %v762, %v979
    %v988 = vadd.f32 %v763, %v980
    %v989 = vadd.f32 %v764, %v981
    %v990 = vadd.f32 %v765, %v982
    %v991 = vxor.u32 %v987, 2147483648
    %v992 = vxor.u32 %v988, 2147483648
    %v993 = vxor.u32 %v990, 2147483648
    %v994 = vmul.f32 %v991, 1.442695
    %v995 = vpow.pop %v994
    %v996 = vmul.f32 %v992, 1.442695
    %v997 = vpow.pop %v996
    %v998 = vmul.f32 %v993, 1.442695
    %v999 = vpow.pop %v998
    %v1000 = vadd.f32 %v995, 1.0
    %v1001 = vadd.f32 %v997, 1.0
    %v1002 = vadd.f32 %v999, 1.0
    %v1003 = vrcp.pop %v1000
    %v1004 = vmul.f32 1.0, %v1003
    %v1005 = vrcp.pop %v1001
    %v1006 = vmul.f32 1.0, %v1005
    %v1007 = vrcp.pop %v1002
    %v1008 = vmul.f32 1.0, %v1007
    %v1009 = vtanh.pop %v989
    %v1011 = vrot.slane %v757, 6
    %v1013 = vmul.f32 %v1006, %v1011
    %v1014 = vmul.f32 %v1004, %v1009
    %v1015 = vadd.f32 %v1013, %v1014
    %v1016 = vtanh.pop %v1015
    %v1017 = vmul.f32 %v1008, %v1016
    %s1018 = scalar_lea.vmem [#allocation8], 4
    %1019 = vst [vmem:[%s1018 - $0x4] sm:$0x30] %v1017
    %v1020 = vld [vmem:[#allocation2] sm:$0xc0]
    %v1021 = vld [vmem:[#allocation2 + $0x8] sm:$0xc0]
    %v1022 = vld [vmem:[#allocation2 + $0x10] sm:$0xc0]
    %v1023 = vld [vmem:[#allocation2 + $0x18] sm:$0xc0]
    %v1024 = vld [vmem:[#allocation6 + $0x100] sm:$0xff]
    %v1025 = vld [vmem:[#allocation6 + $0x108] sm:$0xff]
    %v1026 = vld [vmem:[#allocation6 + $0x110] sm:$0xff]
    %v1027 = vld [vmem:[#allocation6 + $0x118] sm:$0xff]
    %v1028 = vld [vmem:[#allocation6 + $0x120] sm:$0xff]
    %v1029 = vld [vmem:[#allocation6 + $0x128] sm:$0xff]
    %v1030 = vld [vmem:[#allocation6 + $0x130] sm:$0xff]
    %v1031 = vld [vmem:[#allocation6 + $0x138] sm:$0xff]
    %v1032 = vld [vmem:[#allocation6 + $0x140] sm:$0xff]
    %v1033 = vld [vmem:[#allocation6 + $0x148] sm:$0xff]
    %v1034 = vld [vmem:[#allocation6 + $0x150] sm:$0xff]
    %v1035 = vld [vmem:[#allocation6 + $0x158] sm:$0xff]
    %v1036 = vld [vmem:[#allocation6 + $0x160] sm:$0xff]
    %v1037 = vld [vmem:[#allocation6 + $0x168] sm:$0xff]
    %v1038 = vld [vmem:[#allocation6 + $0x170] sm:$0xff]
    %v1039 = vld [vmem:[#allocation6 + $0x178] sm:$0xff]
    %v1040 = vld [vmem:[#allocation6 + $0x180] sm:$0xff]
    %v1041 = vld [vmem:[#allocation6 + $0x188] sm:$0xff]
    %v1042 = vld [vmem:[#allocation6 + $0x190] sm:$0xff]
    %v1043 = vld [vmem:[#allocation6 + $0x198] sm:$0xff]
    %v1044 = vld [vmem:[#allocation6 + $0x1a0] sm:$0xff]
    %v1045 = vld [vmem:[#allocation6 + $0x1a8] sm:$0xff]
    %v1046 = vld [vmem:[#allocation6 + $0x1b0] sm:$0xff]
    %v1047 = vld [vmem:[#allocation6 + $0x1b8] sm:$0xff]
    %v1048 = vld [vmem:[#allocation6 + $0x1c0] sm:$0xff]
    %v1049 = vld [vmem:[#allocation6 + $0x1c8] sm:$0xff]
    %v1050 = vld [vmem:[#allocation6 + $0x1d0] sm:$0xff]
    %v1051 = vld [vmem:[#allocation6 + $0x1d8] sm:$0xff]
    %v1052 = vld [vmem:[#allocation6 + $0x1e0] sm:$0xff]
    %v1053 = vld [vmem:[#allocation6 + $0x1e8] sm:$0xff]
    %v1054 = vld [vmem:[#allocation6 + $0x1f0] sm:$0xff]
    %v1055 = vld [vmem:[#allocation6 + $0x1f8] sm:$0xff]
    %v1056 = vld [vmem:[#allocation6 + $0x200] sm:$0xff]
    %v1057 = vld [vmem:[#allocation6 + $0x208] sm:$0xff]
    %v1058 = vld [vmem:[#allocation6 + $0x210] sm:$0xff]
    %v1059 = vld [vmem:[#allocation6 + $0x218] sm:$0xff]
    %v1060 = vld [vmem:[#allocation6 + $0x220] sm:$0xff]
    %v1061 = vld [vmem:[#allocation6 + $0x228] sm:$0xff]
    %v1062 = vld [vmem:[#allocation6 + $0x230] sm:$0xff]
    %v1063 = vld [vmem:[#allocation6 + $0x238] sm:$0xff]
    %v1064 = vld [vmem:[#allocation6 + $0x240] sm:$0xff]
    %v1065 = vld [vmem:[#allocation6 + $0x248] sm:$0xff]
    %v1066 = vld [vmem:[#allocation6 + $0x250] sm:$0xff]
    %v1067 = vld [vmem:[#allocation6 + $0x258] sm:$0xff]
    %v1068 = vld [vmem:[#allocation6 + $0x260] sm:$0xff]
    %v1069 = vld [vmem:[#allocation6 + $0x268] sm:$0xff]
    %v1070 = vld [vmem:[#allocation6 + $0x270] sm:$0xff]
    %v1071 = vld [vmem:[#allocation6 + $0x278] sm:$0xff]
    %v1072 = vld [vmem:[#allocation6 + $0x280] sm:$0xff]
    %v1073 = vld [vmem:[#allocation6 + $0x288] sm:$0xff]
    %v1074 = vld [vmem:[#allocation6 + $0x290] sm:$0xff]
    %v1075 = vld [vmem:[#allocation6 + $0x298] sm:$0xff]
    %v1076 = vld [vmem:[#allocation6 + $0x2a0] sm:$0xff]
    %v1077 = vld [vmem:[#allocation6 + $0x2a8] sm:$0xff]
    %v1078 = vld [vmem:[#allocation6 + $0x2b0] sm:$0xff]
    %v1079 = vld [vmem:[#allocation6 + $0x2b8] sm:$0xff]
    %v1080 = vld [vmem:[#allocation6 + $0x2c0] sm:$0xff]
    %v1081 = vld [vmem:[#allocation6 + $0x2c8] sm:$0xff]
    %v1082 = vld [vmem:[#allocation6 + $0x2d0] sm:$0xff]
    %v1083 = vld [vmem:[#allocation6 + $0x2d8] sm:$0xff]
    %v1084 = vld [vmem:[#allocation6 + $0x2e0] sm:$0xff]
    %v1085 = vld [vmem:[#allocation6 + $0x2e8] sm:$0xff]
    %v1086 = vld [vmem:[#allocation6 + $0x2f0] sm:$0xff]
    %v1087 = vld [vmem:[#allocation6 + $0x2f8] sm:$0xff]
    %v1089 = vrot.slane %v1017, 4
    %1091 = vmatprep.subr.mxu0 %v1025
    %1092 = vmatpush1.msra.mxu0 %v1024
    %1093 = vmatprep.subr.mxu0 %v1029
    %1094 = vmatpush1.msra.mxu0 %v1028
    %1095 = vmatprep.subr.mxu0 %v1033
    %1096 = vmatpush1.msra.mxu0 %v1032
    %1097 = vmatprep.subr.mxu0 %v1037
    %1098 = vmatpush1.msra.mxu0 %v1036
    %1099 = vmatprep.subr.mxu0 %v1041
    %1100 = vmatpush1.msra.mxu0 %v1040
    %1101 = vmatprep.subr.mxu0 %v1045
    %1102 = vmatpush1.msra.mxu0 %v1044
    %1103 = vmatprep.subr.mxu0 %v1049
    %1104 = vmatpush1.msra.mxu0 %v1048
    %1105 = vmatprep.subr.mxu0 %v1053
    %1106 = vmatpush1.msra.mxu0 %v1052
    %1107 = vmatprep.subr.mxu0 %v1057
    %1108 = vmatpush1.msra.mxu0 %v1056
    %1109 = vmatprep.subr.mxu0 %v1061
    %1110 = vmatpush1.msra.mxu0 %v1060
    %1111 = vmatprep.subr.mxu0 %v1065
    %1112 = vmatpush1.msra.mxu0 %v1064
    %1113 = vmatprep.subr.mxu0 %v1069
    %1114 = vmatpush1.msra.mxu0 %v1068
    %1115 = vmatprep.subr.mxu0 %v1073
    %1116 = vmatpush1.msra.mxu0 %v1072
    %1117 = vmatprep.subr.mxu0 %v1077
    %1118 = vmatpush1.msra.mxu0 %v1076
    %1119 = vmatprep.subr.mxu0 %v1081
    %1120 = vmatpush1.msra.mxu0 %v1080
    %1121 = vmatprep.subr.mxu0 %v1085
    %1122 = vmatpush1.msra.mxu0 %v1084
    %1123 = vmatprep.subr.mxu0 0.0
    %1124 = vmatpush1.msra.mxu0 0.0
    %1125 = vmatprep.subr.mxu0 0.0
    %1126 = vmatpush1.msra.mxu0 0.0
    %1127 = vmatprep.subr.mxu0 0.0
    %1128 = vmatpush1.msra.mxu0 0.0
    %1129 = vmatprep.subr.mxu0 0.0
    %1130 = vmatpush1.msra.mxu0 0.0
    %1131 = vmatprep.subr.mxu0 0.0
    %1132 = vmatpush1.msra.mxu0 0.0
    %1133 = vmatprep.subr.mxu0 0.0
    %1134 = vmatpush1.msra.mxu0 0.0
    %1135 = vmatprep.subr.mxu0 0.0
    %1136 = vmatpush1.msra.mxu0 0.0
    %1137 = vmatprep.subr.mxu0 0.0
    %1138 = vmatpush1.msra.mxu0 0.0
    %1139 = vmatprep.subr.mxu0 0.0
    %1140 = vmatpush1.msra.mxu0 0.0
    %1141 = vmatprep.subr.mxu0 0.0
    %1142 = vmatpush1.msra.mxu0 0.0
    %1143 = vmatprep.subr.mxu0 0.0
    %1144 = vmatpush1.msra.mxu0 0.0
    %1145 = vmatprep.subr.mxu0 0.0
    %1146 = vmatpush1.msra.mxu0 0.0
    %1147 = vmatprep.subr.mxu0 0.0
    %1148 = vmatpush1.msra.mxu0 0.0
    %1149 = vmatprep.subr.mxu0 0.0
    %1150 = vmatpush1.msra.mxu0 0.0
    %1151 = vmatprep.subr.mxu0 0.0
    %1152 = vmatpush1.msra.mxu0 0.0
    %1153 = vmatprep.subr.mxu0 0.0
    %1154 = vmatpush1.msra.mxu0 0.0
    %1155 = vmatprep.mubr.f32.mxu0 0.0
    %1156 = vmatmul.mubr.f32.gmra.mrb[0].mxu0 %v1089
    %v1157 = vpop.f32.mrb[0].mxu0
    %v1158 = vadd.f32 0.0, %v1157
    %v1159 = vpop.f32.mrb[0].mxu0
    %v1160 = vadd.f32 0.0, %v1159
    %1161 = vdwg.mxu0
    %1162 = vmatprep.subr.mxu0 %v1027
    %1163 = vmatpush1.msra.mxu0 %v1026
    %1164 = vmatprep.subr.mxu0 %v1031
    %1165 = vmatpush1.msra.mxu0 %v1030
    %1166 = vmatprep.subr.mxu0 %v1035
    %1167 = vmatpush1.msra.mxu0 %v1034
    %1168 = vmatprep.subr.mxu0 %v1039
    %1169 = vmatpush1.msra.mxu0 %v1038
    %1170 = vmatprep.subr.mxu0 %v1043
    %1171 = vmatpush1.msra.mxu0 %v1042
    %1172 = vmatprep.subr.mxu0 %v1047
    %1173 = vmatpush1.msra.mxu0 %v1046
    %1174 = vmatprep.subr.mxu0 %v1051
    %1175 = vmatpush1.msra.mxu0 %v1050
    %1176 = vmatprep.subr.mxu0 %v1055
    %1177 = vmatpush1.msra.mxu0 %v1054
    %1178 = vmatprep.subr.mxu0 %v1059
    %1179 = vmatpush1.msra.mxu0 %v1058
    %1180 = vmatprep.subr.mxu0 %v1063
    %1181 = vmatpush1.msra.mxu0 %v1062
    %1182 = vmatprep.subr.mxu0 %v1067
    %1183 = vmatpush1.msra.mxu0 %v1066
    %1184 = vmatprep.subr.mxu0 %v1071
    %1185 = vmatpush1.msra.mxu0 %v1070
    %1186 = vmatprep.subr.mxu0 %v1075
    %1187 = vmatpush1.msra.mxu0 %v1074
    %1188 = vmatprep.subr.mxu0 %v1079
    %1189 = vmatpush1.msra.mxu0 %v1078
    %1190 = vmatprep.subr.mxu0 %v1083
    %1191 = vmatpush1.msra.mxu0 %v1082
    %1192 = vmatprep.subr.mxu0 %v1087
    %1193 = vmatpush1.msra.mxu0 %v1086
    %1194 = vmatprep.subr.mxu0 0.0
    %1195 = vmatpush1.msra.mxu0 0.0
    %1196 = vmatprep.subr.mxu0 0.0
    %1197 = vmatpush1.msra.mxu0 0.0
    %1198 = vmatprep.subr.mxu0 0.0
    %1199 = vmatpush1.msra.mxu0 0.0
    %1200 = vmatprep.subr.mxu0 0.0
    %1201 = vmatpush1.msra.mxu0 0.0
    %1202 = vmatprep.subr.mxu0 0.0
    %1203 = vmatpush1.msra.mxu0 0.0
    %1204 = vmatprep.subr.mxu0 0.0
    %1205 = vmatpush1.msra.mxu0 0.0
    %1206 = vmatprep.subr.mxu0 0.0
    %1207 = vmatpush1.msra.mxu0 0.0
    %1208 = vmatprep.subr.mxu0 0.0
    %1209 = vmatpush1.msra.mxu0 0.0
    %1210 = vmatprep.subr.mxu0 0.0
    %1211 = vmatpush1.msra.mxu0 0.0
    %1212 = vmatprep.subr.mxu0 0.0
    %1213 = vmatpush1.msra.mxu0 0.0
    %1214 = vmatprep.subr.mxu0 0.0
    %1215 = vmatpush1.msra.mxu0 0.0
    %1216 = vmatprep.subr.mxu0 0.0
    %1217 = vmatpush1.msra.mxu0 0.0
    %1218 = vmatprep.subr.mxu0 0.0
    %1219 = vmatpush1.msra.mxu0 0.0
    %1220 = vmatprep.subr.mxu0 0.0
    %1221 = vmatpush1.msra.mxu0 0.0
    %1222 = vmatprep.subr.mxu0 0.0
    %1223 = vmatpush1.msra.mxu0 0.0
    %1224 = vmatprep.subr.mxu0 0.0
    %1225 = vmatpush1.msra.mxu0 0.0
    %1226 = vmatprep.mubr.f32.mxu0 0.0
    %1227 = vmatmul.mubr.f32.gmra.mrb[0].mxu0 %v1089
    %v1228 = vpop.f32.mrb[0].mxu0
    %v1229 = vadd.f32 0.0, %v1228
    %v1230 = vpop.f32.mrb[0].mxu0
    %v1231 = vadd.f32 0.0, %v1230
    %1232 = vdwg.mxu0
    %v1237 = vrot.slane %v1158, 2
    %v1238 = vrot.slane %v1160, 2
    %v1239 = vrot.slane %v1229, 2
    %v1240 = vrot.slane %v1231, 2
    %v1245 = vadd.f32 %v1020, %v1237
    %v1246 = vadd.f32 %v1021, %v1238
    %v1247 = vadd.f32 %v1022, %v1239
    %v1248 = vadd.f32 %v1023, %v1240
    %v1249 = vxor.u32 %v1245, 2147483648
    %v1250 = vxor.u32 %v1246, 2147483648
    %v1251 = vxor.u32 %v1248, 2147483648
    %v1252 = vmul.f32 %v1249, 1.442695
    %v1253 = vpow.pop %v1252
    %v1254 = vmul.f32 %v1250, 1.442695
    %v1255 = vpow.pop %v1254
    %v1256 = vmul.f32 %v1251, 1.442695
    %v1257 = vpow.pop %v1256
    %v1258 = vadd.f32 %v1253, 1.0
    %v1259 = vadd.f32 %v1255, 1.0
    %v1260 = vadd.f32 %v1257, 1.0
    %v1261 = vrcp.pop %v1258
    %v1262 = vmul.f32 1.0, %v1261
    %v1263 = vrcp.pop %v1259
    %v1264 = vmul.f32 1.0, %v1263
    %v1265 = vrcp.pop %v1260
    %v1266 = vmul.f32 1.0, %v1265
    %v1267 = vtanh.pop %v1247
    %v1269 = vrot.slane %v1015, 6
    %v1271 = vmul.f32 %v1264, %v1269
    %v1272 = vmul.f32 %v1262, %v1267
    %v1273 = vadd.f32 %v1271, %v1272
    %v1274 = vtanh.pop %v1273
    %v1275 = vmul.f32 %v1266, %v1274
    %s1276 = scalar_lea.vmem [#allocation8], 6
    %1277 = vst [vmem:[%s1276 - $0x6] sm:$0xc0] %v1275
    %v1278 = vld [vmem:[#allocation2 + $0x20] sm:$0x3]
    %v1279 = vld [vmem:[#allocation2 + $0x28] sm:$0x3]
    %v1280 = vld [vmem:[#allocation2 + $0x30] sm:$0x3]
    %v1281 = vld [vmem:[#allocation2 + $0x38] sm:$0x3]
    %v1282 = vld [vmem:[#allocation6 + $0x100] sm:$0xff]
    %v1283 = vld [vmem:[#allocation6 + $0x108] sm:$0xff]
    %v1284 = vld [vmem:[#allocation6 + $0x110] sm:$0xff]
    %v1285 = vld [vmem:[#allocation6 + $0x118] sm:$0xff]
    %v1286 = vld [vmem:[#allocation6 + $0x120] sm:$0xff]
    %v1287 = vld [vmem:[#allocation6 + $0x128] sm:$0xff]
    %v1288 = vld [vmem:[#allocation6 + $0x130] sm:$0xff]
    %v1289 = vld [vmem:[#allocation6 + $0x138] sm:$0xff]
    %v1290 = vld [vmem:[#allocation6 + $0x140] sm:$0xff]
    %v1291 = vld [vmem:[#allocation6 + $0x148] sm:$0xff]
    %v1292 = vld [vmem:[#allocation6 + $0x150] sm:$0xff]
    %v1293 = vld [vmem:[#allocation6 + $0x158] sm:$0xff]
    %v1294 = vld [vmem:[#allocation6 + $0x160] sm:$0xff]
    %v1295 = vld [vmem:[#allocation6 + $0x168] sm:$0xff]
    %v1296 = vld [vmem:[#allocation6 + $0x170] sm:$0xff]
    %v1297 = vld [vmem:[#allocation6 + $0x178] sm:$0xff]
    %v1298 = vld [vmem:[#allocation6 + $0x180] sm:$0xff]
    %v1299 = vld [vmem:[#allocation6 + $0x188] sm:$0xff]
    %v1300 = vld [vmem:[#allocation6 + $0x190] sm:$0xff]
    %v1301 = vld [vmem:[#allocation6 + $0x198] sm:$0xff]
    %v1302 = vld [vmem:[#allocation6 + $0x1a0] sm:$0xff]
    %v1303 = vld [vmem:[#allocation6 + $0x1a8] sm:$0xff]
    %v1304 = vld [vmem:[#allocation6 + $0x1b0] sm:$0xff]
    %v1305 = vld [vmem:[#allocation6 + $0x1b8] sm:$0xff]
    %v1306 = vld [vmem:[#allocation6 + $0x1c0] sm:$0xff]
    %v1307 = vld [vmem:[#allocation6 + $0x1c8] sm:$0xff]
    %v1308 = vld [vmem:[#allocation6 + $0x1d0] sm:$0xff]
    %v1309 = vld [vmem:[#allocation6 + $0x1d8] sm:$0xff]
    %v1310 = vld [vmem:[#allocation6 + $0x1e0] sm:$0xff]
    %v1311 = vld [vmem:[#allocation6 + $0x1e8] sm:$0xff]
    %v1312 = vld [vmem:[#allocation6 + $0x1f0] sm:$0xff]
    %v1313 = vld [vmem:[#allocation6 + $0x1f8] sm:$0xff]
    %v1314 = vld [vmem:[#allocation6 + $0x200] sm:$0xff]
    %v1315 = vld [vmem:[#allocation6 + $0x208] sm:$0xff]
    %v1316 = vld [vmem:[#allocation6 + $0x210] sm:$0xff]
    %v1317 = vld [vmem:[#allocation6 + $0x218] sm:$0xff]
    %v1318 = vld [vmem:[#allocation6 + $0x220] sm:$0xff]
    %v1319 = vld [vmem:[#allocation6 + $0x228] sm:$0xff]
    %v1320 = vld [vmem:[#allocation6 + $0x230] sm:$0xff]
    %v1321 = vld [vmem:[#allocation6 + $0x238] sm:$0xff]
    %v1322 = vld [vmem:[#allocation6 + $0x240] sm:$0xff]
    %v1323 = vld [vmem:[#allocation6 + $0x248] sm:$0xff]
    %v1324 = vld [vmem:[#allocation6 + $0x250] sm:$0xff]
    %v1325 = vld [vmem:[#allocation6 + $0x258] sm:$0xff]
    %v1326 = vld [vmem:[#allocation6 + $0x260] sm:$0xff]
    %v1327 = vld [vmem:[#allocation6 + $0x268] sm:$0xff]
    %v1328 = vld [vmem:[#allocation6 + $0x270] sm:$0xff]
    %v1329 = vld [vmem:[#allocation6 + $0x278] sm:$0xff]
    %v1330 = vld [vmem:[#allocation6 + $0x280] sm:$0xff]
    %v1331 = vld [vmem:[#allocation6 + $0x288] sm:$0xff]
    %v1332 = vld [vmem:[#allocation6 + $0x290] sm:$0xff]
    %v1333 = vld [vmem:[#allocation6 + $0x298] sm:$0xff]
    %v1334 = vld [vmem:[#allocation6 + $0x2a0] sm:$0xff]
    %v1335 = vld [vmem:[#allocation6 + $0x2a8] sm:$0xff]
    %v1336 = vld [vmem:[#allocation6 + $0x2b0] sm:$0xff]
    %v1337 = vld [vmem:[#allocation6 + $0x2b8] sm:$0xff]
    %v1338 = vld [vmem:[#allocation6 + $0x2c0] sm:$0xff]
    %v1339 = vld [vmem:[#allocation6 + $0x2c8] sm:$0xff]
    %v1340 = vld [vmem:[#allocation6 + $0x2d0] sm:$0xff]
    %v1341 = vld [vmem:[#allocation6 + $0x2d8] sm:$0xff]
    %v1342 = vld [vmem:[#allocation6 + $0x2e0] sm:$0xff]
    %v1343 = vld [vmem:[#allocation6 + $0x2e8] sm:$0xff]
    %v1344 = vld [vmem:[#allocation6 + $0x2f0] sm:$0xff]
    %v1345 = vld [vmem:[#allocation6 + $0x2f8] sm:$0xff]
    %v1347 = vrot.slane %v1275, 6
    %1349 = vmatprep.subr.mxu0 %v1283
    %1350 = vmatpush1.msra.mxu0 %v1282
    %1351 = vmatprep.subr.mxu0 %v1287
    %1352 = vmatpush1.msra.mxu0 %v1286
    %1353 = vmatprep.subr.mxu0 %v1291
    %1354 = vmatpush1.msra.mxu0 %v1290
    %1355 = vmatprep.subr.mxu0 %v1295
    %1356 = vmatpush1.msra.mxu0 %v1294
    %1357 = vmatprep.subr.mxu0 %v1299
    %1358 = vmatpush1.msra.mxu0 %v1298
    %1359 = vmatprep.subr.mxu0 %v1303
    %1360 = vmatpush1.msra.mxu0 %v1302
    %1361 = vmatprep.subr.mxu0 %v1307
    %1362 = vmatpush1.msra.mxu0 %v1306
    %1363 = vmatprep.subr.mxu0 %v1311
    %1364 = vmatpush1.msra.mxu0 %v1310
    %1365 = vmatprep.subr.mxu0 %v1315
    %1366 = vmatpush1.msra.mxu0 %v1314
    %1367 = vmatprep.subr.mxu0 %v1319
    %1368 = vmatpush1.msra.mxu0 %v1318
    %1369 = vmatprep.subr.mxu0 %v1323
    %1370 = vmatpush1.msra.mxu0 %v1322
    %1371 = vmatprep.subr.mxu0 %v1327
    %1372 = vmatpush1.msra.mxu0 %v1326
    %1373 = vmatprep.subr.mxu0 %v1331
    %1374 = vmatpush1.msra.mxu0 %v1330
    %1375 = vmatprep.subr.mxu0 %v1335
    %1376 = vmatpush1.msra.mxu0 %v1334
    %1377 = vmatprep.subr.mxu0 %v1339
    %1378 = vmatpush1.msra.mxu0 %v1338
    %1379 = vmatprep.subr.mxu0 %v1343
    %1380 = vmatpush1.msra.mxu0 %v1342
    %1381 = vmatprep.subr.mxu0 0.0
    %1382 = vmatpush1.msra.mxu0 0.0
    %1383 = vmatprep.subr.mxu0 0.0
    %1384 = vmatpush1.msra.mxu0 0.0
    %1385 = vmatprep.subr.mxu0 0.0
    %1386 = vmatpush1.msra.mxu0 0.0
    %1387 = vmatprep.subr.mxu0 0.0
    %1388 = vmatpush1.msra.mxu0 0.0
    %1389 = vmatprep.subr.mxu0 0.0
    %1390 = vmatpush1.msra.mxu0 0.0
    %1391 = vmatprep.subr.mxu0 0.0
    %1392 = vmatpush1.msra.mxu0 0.0
    %1393 = vmatprep.subr.mxu0 0.0
    %1394 = vmatpush1.msra.mxu0 0.0
    %1395 = vmatprep.subr.mxu0 0.0
    %1396 = vmatpush1.msra.mxu0 0.0
    %1397 = vmatprep.subr.mxu0 0.0
    %1398 = vmatpush1.msra.mxu0 0.0
    %1399 = vmatprep.subr.mxu0 0.0
    %1400 = vmatpush1.msra.mxu0 0.0
    %1401 = vmatprep.subr.mxu0 0.0
    %1402 = vmatpush1.msra.mxu0 0.0
    %1403 = vmatprep.subr.mxu0 0.0
    %1404 = vmatpush1.msra.mxu0 0.0
    %1405 = vmatprep.subr.mxu0 0.0
    %1406 = vmatpush1.msra.mxu0 0.0
    %1407 = vmatprep.subr.mxu0 0.0
    %1408 = vmatpush1.msra.mxu0 0.0
    %1409 = vmatprep.subr.mxu0 0.0
    %1410 = vmatpush1.msra.mxu0 0.0
    %1411 = vmatprep.subr.mxu0 0.0
    %1412 = vmatpush1.msra.mxu0 0.0
    %1413 = vmatprep.mubr.f32.mxu0 0.0
    %1414 = vmatmul.mubr.f32.gmra.mrb[0].mxu0 %v1347
    %v1415 = vpop.f32.mrb[0].mxu0
    %v1416 = vadd.f32 0.0, %v1415
    %v1417 = vpop.f32.mrb[0].mxu0
    %v1418 = vadd.f32 0.0, %v1417
    %1419 = vdwg.mxu0
    %1420 = vmatprep.subr.mxu0 %v1285
    %1421 = vmatpush1.msra.mxu0 %v1284
    %1422 = vmatprep.subr.mxu0 %v1289
    %1423 = vmatpush1.msra.mxu0 %v1288
    %1424 = vmatprep.subr.mxu0 %v1293
    %1425 = vmatpush1.msra.mxu0 %v1292
    %1426 = vmatprep.subr.mxu0 %v1297
    %1427 = vmatpush1.msra.mxu0 %v1296
    %1428 = vmatprep.subr.mxu0 %v1301
    %1429 = vmatpush1.msra.mxu0 %v1300
    %1430 = vmatprep.subr.mxu0 %v1305
    %1431 = vmatpush1.msra.mxu0 %v1304
    %1432 = vmatprep.subr.mxu0 %v1309
    %1433 = vmatpush1.msra.mxu0 %v1308
    %1434 = vmatprep.subr.mxu0 %v1313
    %1435 = vmatpush1.msra.mxu0 %v1312
    %1436 = vmatprep.subr.mxu0 %v1317
    %1437 = vmatpush1.msra.mxu0 %v1316
    %1438 = vmatprep.subr.mxu0 %v1321
    %1439 = vmatpush1.msra.mxu0 %v1320
    %1440 = vmatprep.subr.mxu0 %v1325
    %1441 = vmatpush1.msra.mxu0 %v1324
    %1442 = vmatprep.subr.mxu0 %v1329
    %1443 = vmatpush1.msra.mxu0 %v1328
    %1444 = vmatprep.subr.mxu0 %v1333
    %1445 = vmatpush1.msra.mxu0 %v1332
    %1446 = vmatprep.subr.mxu0 %v1337
    %1447 = vmatpush1.msra.mxu0 %v1336
    %1448 = vmatprep.subr.mxu0 %v1341
    %1449 = vmatpush1.msra.mxu0 %v1340
    %1450 = vmatprep.subr.mxu0 %v1345
    %1451 = vmatpush1.msra.mxu0 %v1344
    %1452 = vmatprep.subr.mxu0 0.0
    %1453 = vmatpush1.msra.mxu0 0.0
    %1454 = vmatprep.subr.mxu0 0.0
    %1455 = vmatpush1.msra.mxu0 0.0
    %1456 = vmatprep.subr.mxu0 0.0
    %1457 = vmatpush1.msra.mxu0 0.0
    %1458 = vmatprep.subr.mxu0 0.0
    %1459 = vmatpush1.msra.mxu0 0.0
    %1460 = vmatprep.subr.mxu0 0.0
    %1461 = vmatpush1.msra.mxu0 0.0
    %1462 = vmatprep.subr.mxu0 0.0
    %1463 = vmatpush1.msra.mxu0 0.0
    %1464 = vmatprep.subr.mxu0 0.0
    %1465 = vmatpush1.msra.mxu0 0.0
    %1466 = vmatprep.subr.mxu0 0.0
    %1467 = vmatpush1.msra.mxu0 0.0
    %1468 = vmatprep.subr.mxu0 0.0
    %1469 = vmatpush1.msra.mxu0 0.0
    %1470 = vmatprep.subr.mxu0 0.0
    %1471 = vmatpush1.msra.mxu0 0.0
    %1472 = vmatprep.subr.mxu0 0.0
    %1473 = vmatpush1.msra.mxu0 0.0
    %1474 = vmatprep.subr.mxu0 0.0
    %1475 = vmatpush1.msra.mxu0 0.0
    %1476 = vmatprep.subr.mxu0 0.0
    %1477 = vmatpush1.msra.mxu0 0.0
    %1478 = vmatprep.subr.mxu0 0.0
    %1479 = vmatpush1.msra.mxu0 0.0
    %1480 = vmatprep.subr.mxu0 0.0
    %1481 = vmatpush1.msra.mxu0 0.0
    %1482 = vmatprep.subr.mxu0 0.0
    %1483 = vmatpush1.msra.mxu0 0.0
    %1484 = vmatprep.mubr.f32.mxu0 0.0
    %1485 = vmatmul.mubr.f32.gmra.mrb[0].mxu0 %v1347
    %v1486 = vpop.f32.mrb[0].mxu0
    %v1487 = vadd.f32 0.0, %v1486
    %v1488 = vpop.f32.mrb[0].mxu0
    %v1489 = vadd.f32 0.0, %v1488
    %1490 = vdwg.mxu0
    %v1491 = vadd.f32 %v1278, %v1416
    %v1492 = vadd.f32 %v1279, %v1418
    %v1493 = vadd.f32 %v1280, %v1487
    %v1494 = vadd.f32 %v1281, %v1489
    %v1495 = vxor.u32 %v1491, 2147483648
    %v1496 = vxor.u32 %v1492, 2147483648
    %v1497 = vxor.u32 %v1494, 2147483648
    %v1498 = vmul.f32 %v1495, 1.442695
    %v1499 = vpow.pop %v1498
    %v1500 = vmul.f32 %v1496, 1.442695
    %v1501 = vpow.pop %v1500
    %v1502 = vmul.f32 %v1497, 1.442695
    %v1503 = vpow.pop %v1502
    %v1504 = vadd.f32 %v1499, 1.0
    %v1505 = vadd.f32 %v1501, 1.0
    %v1506 = vadd.f32 %v1503, 1.0
    %v1507 = vrcp.pop %v1504
    %v1508 = vmul.f32 1.0, %v1507
    %v1509 = vrcp.pop %v1505
    %v1510 = vmul.f32 1.0, %v1509
    %v1511 = vrcp.pop %v1506
    %v1512 = vmul.f32 1.0, %v1511
    %v1513 = vtanh.pop %v1493
    %v1515 = vrot.slane %v1273, 6
    %v1517 = vmul.f32 %v1510, %v1515
    %v1518 = vmul.f32 %v1508, %v1513
    %v1519 = vadd.f32 %v1517, %v1518
    %v1520 = vtanh.pop %v1519
    %v1521 = vmul.f32 %v1512, %v1520
    %s1522 = scalar_lea.vmem [#allocation8], 8
    %1523 = vst [vmem:[%s1522] sm:$0x3] %v1521
    %v1524 = vld [vmem:[#allocation2 + $0x20] sm:$0xc]
    %v1525 = vld [vmem:[#allocation2 + $0x28] sm:$0xc]
    %v1526 = vld [vmem:[#allocation2 + $0x30] sm:$0xc]
    %v1527 = vld [vmem:[#allocation2 + $0x38] sm:$0xc]
    %v1528 = vld [vmem:[#allocation6 + $0x100] sm:$0xff]
    %v1529 = vld [vmem:[#allocation6 + $0x108] sm:$0xff]
    %v1530 = vld [vmem:[#allocation6 + $0x110] sm:$0xff]
    %v1531 = vld [vmem:[#allocation6 + $0x118] sm:$0xff]
    %v1532 = vld [vmem:[#allocation6 + $0x120] sm:$0xff]
    %v1533 = vld [vmem:[#allocation6 + $0x128] sm:$0xff]
    %v1534 = vld [vmem:[#allocation6 + $0x130] sm:$0xff]
    %v1535 = vld [vmem:[#allocation6 + $0x138] sm:$0xff]
    %v1536 = vld [vmem:[#allocation6 + $0x140] sm:$0xff]
    %v1537 = vld [vmem:[#allocation6 + $0x148] sm:$0xff]
    %v1538 = vld [vmem:[#allocation6 + $0x150] sm:$0xff]
    %v1539 = vld [vmem:[#allocation6 + $0x158] sm:$0xff]
    %v1540 = vld [vmem:[#allocation6 + $0x160] sm:$0xff]
    %v1541 = vld [vmem:[#allocation6 + $0x168] sm:$0xff]
    %v1542 = vld [vmem:[#allocation6 + $0x170] sm:$0xff]
    %v1543 = vld [vmem:[#allocation6 + $0x178] sm:$0xff]
    %v1544 = vld [vmem:[#allocation6 + $0x180] sm:$0xff]
    %v1545 = vld [vmem:[#allocation6 + $0x188] sm:$0xff]
    %v1546 = vld [vmem:[#allocation6 + $0x190] sm:$0xff]
    %v1547 = vld [vmem:[#allocation6 + $0x198] sm:$0xff]
    %v1548 = vld [vmem:[#allocation6 + $0x1a0] sm:$0xff]
    %v1549 = vld [vmem:[#allocation6 + $0x1a8] sm:$0xff]
    %v1550 = vld [vmem:[#allocation6 + $0x1b0] sm:$0xff]
    %v1551 = vld [vmem:[#allocation6 + $0x1b8] sm:$0xff]
    %v1552 = vld [vmem:[#allocation6 + $0x1c0] sm:$0xff]
    %v1553 = vld [vmem:[#allocation6 + $0x1c8] sm:$0xff]
    %v1554 = vld [vmem:[#allocation6 + $0x1d0] sm:$0xff]
    %v1555 = vld [vmem:[#allocation6 + $0x1d8] sm:$0xff]
    %v1556 = vld [vmem:[#allocation6 + $0x1e0] sm:$0xff]
    %v1557 = vld [vmem:[#allocation6 + $0x1e8] sm:$0xff]
    %v1558 = vld [vmem:[#allocation6 + $0x1f0] sm:$0xff]
    %v1559 = vld [vmem:[#allocation6 + $0x1f8] sm:$0xff]
    %v1560 = vld [vmem:[#allocation6 + $0x200] sm:$0xff]
    %v1561 = vld [vmem:[#allocation6 + $0x208] sm:$0xff]
    %v1562 = vld [vmem:[#allocation6 + $0x210] sm:$0xff]
    %v1563 = vld [vmem:[#allocation6 + $0x218] sm:$0xff]
    %v1564 = vld [vmem:[#allocation6 + $0x220] sm:$0xff]
    %v1565 = vld [vmem:[#allocation6 + $0x228] sm:$0xff]
    %v1566 = vld [vmem:[#allocation6 + $0x230] sm:$0xff]
    %v1567 = vld [vmem:[#allocation6 + $0x238] sm:$0xff]
    %v1568 = vld [vmem:[#allocation6 + $0x240] sm:$0xff]
    %v1569 = vld [vmem:[#allocation6 + $0x248] sm:$0xff]
    %v1570 = vld [vmem:[#allocation6 + $0x250] sm:$0xff]
    %v1571 = vld [vmem:[#allocation6 + $0x258] sm:$0xff]
    %v1572 = vld [vmem:[#allocation6 + $0x260] sm:$0xff]
    %v1573 = vld [vmem:[#allocation6 + $0x268] sm:$0xff]
    %v1574 = vld [vmem:[#allocation6 + $0x270] sm:$0xff]
    %v1575 = vld [vmem:[#allocation6 + $0x278] sm:$0xff]
    %v1576 = vld [vmem:[#allocation6 + $0x280] sm:$0xff]
    %v1577 = vld [vmem:[#allocation6 + $0x288] sm:$0xff]
    %v1578 = vld [vmem:[#allocation6 + $0x290] sm:$0xff]
    %v1579 = vld [vmem:[#allocation6 + $0x298] sm:$0xff]
    %v1580 = vld [vmem:[#allocation6 + $0x2a0] sm:$0xff]
    %v1581 = vld [vmem:[#allocation6 + $0x2a8] sm:$0xff]
    %v1582 = vld [vmem:[#allocation6 + $0x2b0] sm:$0xff]
    %v1583 = vld [vmem:[#allocation6 + $0x2b8] sm:$0xff]
    %v1584 = vld [vmem:[#allocation6 + $0x2c0] sm:$0xff]
    %v1585 = vld [vmem:[#allocation6 + $0x2c8] sm:$0xff]
    %v1586 = vld [vmem:[#allocation6 + $0x2d0] sm:$0xff]
    %v1587 = vld [vmem:[#allocation6 + $0x2d8] sm:$0xff]
    %v1588 = vld [vmem:[#allocation6 + $0x2e0] sm:$0xff]
    %v1589 = vld [vmem:[#allocation6 + $0x2e8] sm:$0xff]
    %v1590 = vld [vmem:[#allocation6 + $0x2f0] sm:$0xff]
    %v1591 = vld [vmem:[#allocation6 + $0x2f8] sm:$0xff]
    %1592 = vmatprep.subr.mxu0 %v1529
    %1593 = vmatpush1.msra.mxu0 %v1528
    %1594 = vmatprep.subr.mxu0 %v1533
    %1595 = vmatpush1.msra.mxu0 %v1532
    %1596 = vmatprep.subr.mxu0 %v1537
    %1597 = vmatpush1.msra.mxu0 %v1536
    %1598 = vmatprep.subr.mxu0 %v1541
    %1599 = vmatpush1.msra.mxu0 %v1540
    %1600 = vmatprep.subr.mxu0 %v1545
    %1601 = vmatpush1.msra.mxu0 %v1544
    %1602 = vmatprep.subr.mxu0 %v1549
    %1603 = vmatpush1.msra.mxu0 %v1548
    %1604 = vmatprep.subr.mxu0 %v1553
    %1605 = vmatpush1.msra.mxu0 %v1552
    %1606 = vmatprep.subr.mxu0 %v1557
    %1607 = vmatpush1.msra.mxu0 %v1556
    %1608 = vmatprep.subr.mxu0 %v1561
    %1609 = vmatpush1.msra.mxu0 %v1560
    %1610 = vmatprep.subr.mxu0 %v1565
    %1611 = vmatpush1.msra.mxu0 %v1564
    %1612 = vmatprep.subr.mxu0 %v1569
    %1613 = vmatpush1.msra.mxu0 %v1568
    %1614 = vmatprep.subr.mxu0 %v1573
    %1615 = vmatpush1.msra.mxu0 %v1572
    %1616 = vmatprep.subr.mxu0 %v1577
    %1617 = vmatpush1.msra.mxu0 %v1576
    %1618 = vmatprep.subr.mxu0 %v1581
    %1619 = vmatpush1.msra.mxu0 %v1580
    %1620 = vmatprep.subr.mxu0 %v1585
    %1621 = vmatpush1.msra.mxu0 %v1584
    %1622 = vmatprep.subr.mxu0 %v1589
    %1623 = vmatpush1.msra.mxu0 %v1588
    %1624 = vmatprep.subr.mxu0 0.0
    %1625 = vmatpush1.msra.mxu0 0.0
    %1626 = vmatprep.subr.mxu0 0.0
    %1627 = vmatpush1.msra.mxu0 0.0
    %1628 = vmatprep.subr.mxu0 0.0
    %1629 = vmatpush1.msra.mxu0 0.0
    %1630 = vmatprep.subr.mxu0 0.0
    %1631 = vmatpush1.msra.mxu0 0.0
    %1632 = vmatprep.subr.mxu0 0.0
    %1633 = vmatpush1.msra.mxu0 0.0
    %1634 = vmatprep.subr.mxu0 0.0
    %1635 = vmatpush1.msra.mxu0 0.0
    %1636 = vmatprep.subr.mxu0 0.0
    %1637 = vmatpush1.msra.mxu0 0.0
    %1638 = vmatprep.subr.mxu0 0.0
    %1639 = vmatpush1.msra.mxu0 0.0
    %1640 = vmatprep.subr.mxu0 0.0
    %1641 = vmatpush1.msra.mxu0 0.0
    %1642 = vmatprep.subr.mxu0 0.0
    %1643 = vmatpush1.msra.mxu0 0.0
    %1644 = vmatprep.subr.mxu0 0.0
    %1645 = vmatpush1.msra.mxu0 0.0
    %1646 = vmatprep.subr.mxu0 0.0
    %1647 = vmatpush1.msra.mxu0 0.0
    %1648 = vmatprep.subr.mxu0 0.0
    %1649 = vmatpush1.msra.mxu0 0.0
    %1650 = vmatprep.subr.mxu0 0.0
    %1651 = vmatpush1.msra.mxu0 0.0
    %1652 = vmatprep.subr.mxu0 0.0
    %1653 = vmatpush1.msra.mxu0 0.0
    %1654 = vmatprep.subr.mxu0 0.0
    %1655 = vmatpush1.msra.mxu0 0.0
    %1656 = vmatprep.mubr.f32.mxu0 0.0
    %1657 = vmatmul.mubr.f32.gmra.mrb[0].mxu0 %v1521
    %v1658 = vpop.f32.mrb[0].mxu0
    %v1659 = vadd.f32 0.0, %v1658
    %v1660 = vpop.f32.mrb[0].mxu0
    %v1661 = vadd.f32 0.0, %v1660
    %1662 = vdwg.mxu0
    %1663 = vmatprep.subr.mxu0 %v1531
    %1664 = vmatpush1.msra.mxu0 %v1530
    %1665 = vmatprep.subr.mxu0 %v1535
    %1666 = vmatpush1.msra.mxu0 %v1534
    %1667 = vmatprep.subr.mxu0 %v1539
    %1668 = vmatpush1.msra.mxu0 %v1538
    %1669 = vmatprep.subr.mxu0 %v1543
    %1670 = vmatpush1.msra.mxu0 %v1542
    %1671 = vmatprep.subr.mxu0 %v1547
    %1672 = vmatpush1.msra.mxu0 %v1546
    %1673 = vmatprep.subr.mxu0 %v1551
    %1674 = vmatpush1.msra.mxu0 %v1550
    %1675 = vmatprep.subr.mxu0 %v1555
    %1676 = vmatpush1.msra.mxu0 %v1554
    %1677 = vmatprep.subr.mxu0 %v1559
    %1678 = vmatpush1.msra.mxu0 %v1558
    %1679 = vmatprep.subr.mxu0 %v1563
    %1680 = vmatpush1.msra.mxu0 %v1562
    %1681 = vmatprep.subr.mxu0 %v1567
    %1682 = vmatpush1.msra.mxu0 %v1566
    %1683 = vmatprep.subr.mxu0 %v1571
    %1684 = vmatpush1.msra.mxu0 %v1570
    %1685 = vmatprep.subr.mxu0 %v1575
    %1686 = vmatpush1.msra.mxu0 %v1574
    %1687 = vmatprep.subr.mxu0 %v1579
    %1688 = vmatpush1.msra.mxu0 %v1578
    %1689 = vmatprep.subr.mxu0 %v1583
    %1690 = vmatpush1.msra.mxu0 %v1582
    %1691 = vmatprep.subr.mxu0 %v1587
    %1692 = vmatpush1.msra.mxu0 %v1586
    %1693 = vmatprep.subr.mxu0 %v1591
    %1694 = vmatpush1.msra.mxu0 %v1590
    %1695 = vmatprep.subr.mxu0 0.0
    %1696 = vmatpush1.msra.mxu0 0.0
    %1697 = vmatprep.subr.mxu0 0.0
    %1698 = vmatpush1.msra.mxu0 0.0
    %1699 = vmatprep.subr.mxu0 0.0
    %1700 = vmatpush1.msra.mxu0 0.0
    %1701 = vmatprep.subr.mxu0 0.0
    %1702 = vmatpush1.msra.mxu0 0.0
    %1703 = vmatprep.subr.mxu0 0.0
    %1704 = vmatpush1.msra.mxu0 0.0
    %1705 = vmatprep.subr.mxu0 0.0
    %1706 = vmatpush1.msra.mxu0 0.0
    %1707 = vmatprep.subr.mxu0 0.0
    %1708 = vmatpush1.msra.mxu0 0.0
    %1709 = vmatprep.subr.mxu0 0.0
    %1710 = vmatpush1.msra.mxu0 0.0
    %1711 = vmatprep.subr.mxu0 0.0
    %1712 = vmatpush1.msra.mxu0 0.0
    %1713 = vmatprep.subr.mxu0 0.0
    %1714 = vmatpush1.msra.mxu0 0.0
    %1715 = vmatprep.subr.mxu0 0.0
    %1716 = vmatpush1.msra.mxu0 0.0
    %1717 = vmatprep.subr.mxu0 0.0
    %1718 = vmatpush1.msra.mxu0 0.0
    %1719 = vmatprep.subr.mxu0 0.0
    %1720 = vmatpush1.msra.mxu0 0.0
    %1721 = vmatprep.subr.mxu0 0.0
    %1722 = vmatpush1.msra.mxu0 0.0
    %1723 = vmatprep.subr.mxu0 0.0
    %1724 = vmatpush1.msra.mxu0 0.0
    %1725 = vmatprep.subr.mxu0 0.0
    %1726 = vmatpush1.msra.mxu0 0.0
    %1727 = vmatprep.mubr.f32.mxu0 0.0
    %1728 = vmatmul.mubr.f32.gmra.mrb[0].mxu0 %v1521
    %v1729 = vpop.f32.mrb[0].mxu0
    %v1730 = vadd.f32 0.0, %v1729
    %v1731 = vpop.f32.mrb[0].mxu0
    %v1732 = vadd.f32 0.0, %v1731
    %1733 = vdwg.mxu0
    %v1738 = vrot.slane %v1659, 6
    %v1739 = vrot.slane %v1661, 6
    %v1740 = vrot.slane %v1730, 6
    %v1741 = vrot.slane %v1732, 6
    %v1746 = vadd.f32 %v1524, %v1738
    %v1747 = vadd.f32 %v1525, %v1739
    %v1748 = vadd.f32 %v1526, %v1740
    %v1749 = vadd.f32 %v1527, %v1741
    %v1750 = vxor.u32 %v1746, 2147483648
    %v1751 = vxor.u32 %v1747, 2147483648
    %v1752 = vxor.u32 %v1749, 2147483648
    %v1753 = vmul.f32 %v1750, 1.442695
    %v1754 = vpow.pop %v1753
    %v1755 = vmul.f32 %v1751, 1.442695
    %v1756 = vpow.pop %v1755
    %v1757 = vmul.f32 %v1752, 1.442695
    %v1758 = vpow.pop %v1757
    %v1759 = vadd.f32 %v1754, 1.0
    %v1760 = vadd.f32 %v1756, 1.0
    %v1761 = vadd.f32 %v1758, 1.0
    %v1762 = vrcp.pop %v1759
    %v1763 = vmul.f32 1.0, %v1762
    %v1764 = vrcp.pop %v1760
    %v1765 = vmul.f32 1.0, %v1764
    %v1766 = vrcp.pop %v1761
    %v1767 = vmul.f32 1.0, %v1766
    %v1768 = vtanh.pop %v1748
    %v1770 = vrot.slane %v1519, 6
    %v1772 = vmul.f32 %v1765, %v1770
    %v1773 = vmul.f32 %v1763, %v1768
    %v1774 = vadd.f32 %v1772, %v1773
    %v1775 = vtanh.pop %v1774
    %v1776 = vmul.f32 %v1767, %v1775
    %s1777 = scalar_lea.vmem [#allocation8], 10
    %1778 = vst [vmem:[%s1777 - $0x2] sm:$0xc] %v1776
    %v1779 = vld [vmem:[#allocation2 + $0x20] sm:$0x30]
    %v1780 = vld [vmem:[#allocation2 + $0x28] sm:$0x30]
    %v1781 = vld [vmem:[#allocation2 + $0x30] sm:$0x30]
    %v1782 = vld [vmem:[#allocation2 + $0x38] sm:$0x30]
    %v1783 = vld [vmem:[#allocation6 + $0x100] sm:$0xff]
    %v1784 = vld [vmem:[#allocation6 + $0x108] sm:$0xff]
    %v1785 = vld [vmem:[#allocation6 + $0x110] sm:$0xff]
    %v1786 = vld [vmem:[#allocation6 + $0x118] sm:$0xff]
    %v1787 = vld [vmem:[#allocation6 + $0x120] sm:$0xff]
    %v1788 = vld [vmem:[#allocation6 + $0x128] sm:$0xff]
    %v1789 = vld [vmem:[#allocation6 + $0x130] sm:$0xff]
    %v1790 = vld [vmem:[#allocation6 + $0x138] sm:$0xff]
    %v1791 = vld [vmem:[#allocation6 + $0x140] sm:$0xff]
    %v1792 = vld [vmem:[#allocation6 + $0x148] sm:$0xff]
    %v1793 = vld [vmem:[#allocation6 + $0x150] sm:$0xff]
    %v1794 = vld [vmem:[#allocation6 + $0x158] sm:$0xff]
    %v1795 = vld [vmem:[#allocation6 + $0x160] sm:$0xff]
    %v1796 = vld [vmem:[#allocation6 + $0x168] sm:$0xff]
    %v1797 = vld [vmem:[#allocation6 + $0x170] sm:$0xff]
    %v1798 = vld [vmem:[#allocation6 + $0x178] sm:$0xff]
    %v1799 = vld [vmem:[#allocation6 + $0x180] sm:$0xff]
    %v1800 = vld [vmem:[#allocation6 + $0x188] sm:$0xff]
    %v1801 = vld [vmem:[#allocation6 + $0x190] sm:$0xff]
    %v1802 = vld [vmem:[#allocation6 + $0x198] sm:$0xff]
    %v1803 = vld [vmem:[#allocation6 + $0x1a0] sm:$0xff]
    %v1804 = vld [vmem:[#allocation6 + $0x1a8] sm:$0xff]
    %v1805 = vld [vmem:[#allocation6 + $0x1b0] sm:$0xff]
    %v1806 = vld [vmem:[#allocation6 + $0x1b8] sm:$0xff]
    %v1807 = vld [vmem:[#allocation6 + $0x1c0] sm:$0xff]
    %v1808 = vld [vmem:[#allocation6 + $0x1c8] sm:$0xff]
    %v1809 = vld [vmem:[#allocation6 + $0x1d0] sm:$0xff]
    %v1810 = vld [vmem:[#allocation6 + $0x1d8] sm:$0xff]
    %v1811 = vld [vmem:[#allocation6 + $0x1e0] sm:$0xff]
    %v1812 = vld [vmem:[#allocation6 + $0x1e8] sm:$0xff]
    %v1813 = vld [vmem:[#allocation6 + $0x1f0] sm:$0xff]
    %v1814 = vld [vmem:[#allocation6 + $0x1f8] sm:$0xff]
    %v1815 = vld [vmem:[#allocation6 + $0x200] sm:$0xff]
    %v1816 = vld [vmem:[#allocation6 + $0x208] sm:$0xff]
    %v1817 = vld [vmem:[#allocation6 + $0x210] sm:$0xff]
    %v1818 = vld [vmem:[#allocation6 + $0x218] sm:$0xff]
    %v1819 = vld [vmem:[#allocation6 + $0x220] sm:$0xff]
    %v1820 = vld [vmem:[#allocation6 + $0x228] sm:$0xff]
    %v1821 = vld [vmem:[#allocation6 + $0x230] sm:$0xff]
    %v1822 = vld [vmem:[#allocation6 + $0x238] sm:$0xff]
    %v1823 = vld [vmem:[#allocation6 + $0x240] sm:$0xff]
    %v1824 = vld [vmem:[#allocation6 + $0x248] sm:$0xff]
    %v1825 = vld [vmem:[#allocation6 + $0x250] sm:$0xff]
    %v1826 = vld [vmem:[#allocation6 + $0x258] sm:$0xff]
    %v1827 = vld [vmem:[#allocation6 + $0x260] sm:$0xff]
    %v1828 = vld [vmem:[#allocation6 + $0x268] sm:$0xff]
    %v1829 = vld [vmem:[#allocation6 + $0x270] sm:$0xff]
    %v1830 = vld [vmem:[#allocation6 + $0x278] sm:$0xff]
    %v1831 = vld [vmem:[#allocation6 + $0x280] sm:$0xff]
    %v1832 = vld [vmem:[#allocation6 + $0x288] sm:$0xff]
    %v1833 = vld [vmem:[#allocation6 + $0x290] sm:$0xff]
    %v1834 = vld [vmem:[#allocation6 + $0x298] sm:$0xff]
    %v1835 = vld [vmem:[#allocation6 + $0x2a0] sm:$0xff]
    %v1836 = vld [vmem:[#allocation6 + $0x2a8] sm:$0xff]
    %v1837 = vld [vmem:[#allocation6 + $0x2b0] sm:$0xff]
    %v1838 = vld [vmem:[#allocation6 + $0x2b8] sm:$0xff]
    %v1839 = vld [vmem:[#allocation6 + $0x2c0] sm:$0xff]
    %v1840 = vld [vmem:[#allocation6 + $0x2c8] sm:$0xff]
    %v1841 = vld [vmem:[#allocation6 + $0x2d0] sm:$0xff]
    %v1842 = vld [vmem:[#allocation6 + $0x2d8] sm:$0xff]
    %v1843 = vld [vmem:[#allocation6 + $0x2e0] sm:$0xff]
    %v1844 = vld [vmem:[#allocation6 + $0x2e8] sm:$0xff]
    %v1845 = vld [vmem:[#allocation6 + $0x2f0] sm:$0xff]
    %v1846 = vld [vmem:[#allocation6 + $0x2f8] sm:$0xff]
    %v1848 = vrot.slane %v1776, 2
    %1850 = vmatprep.subr.mxu0 %v1784
    %1851 = vmatpush1.msra.mxu0 %v1783
    %1852 = vmatprep.subr.mxu0 %v1788
    %1853 = vmatpush1.msra.mxu0 %v1787
    %1854 = vmatprep.subr.mxu0 %v1792
    %1855 = vmatpush1.msra.mxu0 %v1791
    %1856 = vmatprep.subr.mxu0 %v1796
    %1857 = vmatpush1.msra.mxu0 %v1795
    %1858 = vmatprep.subr.mxu0 %v1800
    %1859 = vmatpush1.msra.mxu0 %v1799
    %1860 = vmatprep.subr.mxu0 %v1804
    %1861 = vmatpush1.msra.mxu0 %v1803
    %1862 = vmatprep.subr.mxu0 %v1808
    %1863 = vmatpush1.msra.mxu0 %v1807
    %1864 = vmatprep.subr.mxu0 %v1812
    %1865 = vmatpush1.msra.mxu0 %v1811
    %1866 = vmatprep.subr.mxu0 %v1816
    %1867 = vmatpush1.msra.mxu0 %v1815
    %1868 = vmatprep.subr.mxu0 %v1820
    %1869 = vmatpush1.msra.mxu0 %v1819
    %1870 = vmatprep.subr.mxu0 %v1824
    %1871 = vmatpush1.msra.mxu0 %v1823
    %1872 = vmatprep.subr.mxu0 %v1828
    %1873 = vmatpush1.msra.mxu0 %v1827
    %1874 = vmatprep.subr.mxu0 %v1832
    %1875 = vmatpush1.msra.mxu0 %v1831
    %1876 = vmatprep.subr.mxu0 %v1836
    %1877 = vmatpush1.msra.mxu0 %v1835
    %1878 = vmatprep.subr.mxu0 %v1840
    %1879 = vmatpush1.msra.mxu0 %v1839
    %1880 = vmatprep.subr.mxu0 %v1844
    %1881 = vmatpush1.msra.mxu0 %v1843
    %1882 = vmatprep.subr.mxu0 0.0
    %1883 = vmatpush1.msra.mxu0 0.0
    %1884 = vmatprep.subr.mxu0 0.0
    %1885 = vmatpush1.msra.mxu0 0.0
    %1886 = vmatprep.subr.mxu0 0.0
    %1887 = vmatpush1.msra.mxu0 0.0
    %1888 = vmatprep.subr.mxu0 0.0
    %1889 = vmatpush1.msra.mxu0 0.0
    %1890 = vmatprep.subr.mxu0 0.0
    %1891 = vmatpush1.msra.mxu0 0.0
    %1892 = vmatprep.subr.mxu0 0.0
    %1893 = vmatpush1.msra.mxu0 0.0
    %1894 = vmatprep.subr.mxu0 0.0
    %1895 = vmatpush1.msra.mxu0 0.0
    %1896 = vmatprep.subr.mxu0 0.0
    %1897 = vmatpush1.msra.mxu0 0.0
    %1898 = vmatprep.subr.mxu0 0.0
    %1899 = vmatpush1.msra.mxu0 0.0
    %1900 = vmatprep.subr.mxu0 0.0
    %1901 = vmatpush1.msra.mxu0 0.0
    %1902 = vmatprep.subr.mxu0 0.0
    %1903 = vmatpush1.msra.mxu0 0.0
    %1904 = vmatprep.subr.mxu0 0.0
    %1905 = vmatpush1.msra.mxu0 0.0
    %1906 = vmatprep.subr.mxu0 0.0
    %1907 = vmatpush1.msra.mxu0 0.0
    %1908 = vmatprep.subr.mxu0 0.0
    %1909 = vmatpush1.msra.mxu0 0.0
    %1910 = vmatprep.subr.mxu0 0.0
    %1911 = vmatpush1.msra.mxu0 0.0
    %1912 = vmatprep.subr.mxu0 0.0
    %1913 = vmatpush1.msra.mxu0 0.0
    %1914 = vmatprep.mubr.f32.mxu0 0.0
    %1915 = vmatmul.mubr.f32.gmra.mrb[0].mxu0 %v1848
    %v1916 = vpop.f32.mrb[0].mxu0
    %v1917 = vadd.f32 0.0, %v1916
    %v1918 = vpop.f32.mrb[0].mxu0
    %v1919 = vadd.f32 0.0, %v1918
    %1920 = vdwg.mxu0
    %1921 = vmatprep.subr.mxu0 %v1786
    %1922 = vmatpush1.msra.mxu0 %v1785
    %1923 = vmatprep.subr.mxu0 %v1790
    %1924 = vmatpush1.msra.mxu0 %v1789
    %1925 = vmatprep.subr.mxu0 %v1794
    %1926 = vmatpush1.msra.mxu0 %v1793
    %1927 = vmatprep.subr.mxu0 %v1798
    %1928 = vmatpush1.msra.mxu0 %v1797
    %1929 = vmatprep.subr.mxu0 %v1802
    %1930 = vmatpush1.msra.mxu0 %v1801
    %1931 = vmatprep.subr.mxu0 %v1806
    %1932 = vmatpush1.msra.mxu0 %v1805
    %1933 = vmatprep.subr.mxu0 %v1810
    %1934 = vmatpush1.msra.mxu0 %v1809
    %1935 = vmatprep.subr.mxu0 %v1814
    %1936 = vmatpush1.msra.mxu0 %v1813
    %1937 = vmatprep.subr.mxu0 %v1818
    %1938 = vmatpush1.msra.mxu0 %v1817
    %1939 = vmatprep.subr.mxu0 %v1822
    %1940 = vmatpush1.msra.mxu0 %v1821
    %1941 = vmatprep.subr.mxu0 %v1826
    %1942 = vmatpush1.msra.mxu0 %v1825
    %1943 = vmatprep.subr.mxu0 %v1830
    %1944 = vmatpush1.msra.mxu0 %v1829
    %1945 = vmatprep.subr.mxu0 %v1834
    %1946 = vmatpush1.msra.mxu0 %v1833
    %1947 = vmatprep.subr.mxu0 %v1838
    %1948 = vmatpush1.msra.mxu0 %v1837
    %1949 = vmatprep.subr.mxu0 %v1842
    %1950 = vmatpush1.msra.mxu0 %v1841
    %1951 = vmatprep.subr.mxu0 %v1846
    %1952 = vmatpush1.msra.mxu0 %v1845
    %1953 = vmatprep.subr.mxu0 0.0
    %1954 = vmatpush1.msra.mxu0 0.0
    %1955 = vmatprep.subr.mxu0 0.0
    %1956 = vmatpush1.msra.mxu0 0.0
    %1957 = vmatprep.subr.mxu0 0.0
    %1958 = vmatpush1.msra.mxu0 0.0
    %1959 = vmatprep.subr.mxu0 0.0
    %1960 = vmatpush1.msra.mxu0 0.0
    %1961 = vmatprep.subr.mxu0 0.0
    %1962 = vmatpush1.msra.mxu0 0.0
    %1963 = vmatprep.subr.mxu0 0.0
    %1964 = vmatpush1.msra.mxu0 0.0
    %1965 = vmatprep.subr.mxu0 0.0
    %1966 = vmatpush1.msra.mxu0 0.0
    %1967 = vmatprep.subr.mxu0 0.0
    %1968 = vmatpush1.msra.mxu0 0.0
    %1969 = vmatprep.subr.mxu0 0.0
    %1970 = vmatpush1.msra.mxu0 0.0
    %1971 = vmatprep.subr.mxu0 0.0
    %1972 = vmatpush1.msra.mxu0 0.0
    %1973 = vmatprep.subr.mxu0 0.0
    %1974 = vmatpush1.msra.mxu0 0.0
    %1975 = vmatprep.subr.mxu0 0.0
    %1976 = vmatpush1.msra.mxu0 0.0
    %1977 = vmatprep.subr.mxu0 0.0
    %1978 = vmatpush1.msra.mxu0 0.0
    %1979 = vmatprep.subr.mxu0 0.0
    %1980 = vmatpush1.msra.mxu0 0.0
    %1981 = vmatprep.subr.mxu0 0.0
    %1982 = vmatpush1.msra.mxu0 0.0
    %1983 = vmatprep.subr.mxu0 0.0
    %1984 = vmatpush1.msra.mxu0 0.0
    %1985 = vmatprep.mubr.f32.mxu0 0.0
    %1986 = vmatmul.mubr.f32.gmra.mrb[0].mxu0 %v1848
    %v1987 = vpop.f32.mrb[0].mxu0
    %v1988 = vadd.f32 0.0, %v1987
    %v1989 = vpop.f32.mrb[0].mxu0
    %v1990 = vadd.f32 0.0, %v1989
    %1991 = vdwg.mxu0
    %v1996 = vrot.slane %v1917, 4
    %v1997 = vrot.slane %v1919, 4
    %v1998 = vrot.slane %v1988, 4
    %v1999 = vrot.slane %v1990, 4
    %v2004 = vadd.f32 %v1779, %v1996
    %v2005 = vadd.f32 %v1780, %v1997
    %v2006 = vadd.f32 %v1781, %v1998
    %v2007 = vadd.f32 %v1782, %v1999
    %v2008 = vxor.u32 %v2004, 2147483648
    %v2009 = vxor.u32 %v2005, 2147483648
    %v2010 = vxor.u32 %v2007, 2147483648
    %v2011 = vmul.f32 %v2008, 1.442695
    %v2012 = vpow.pop %v2011
    %v2013 = vmul.f32 %v2009, 1.442695
    %v2014 = vpow.pop %v2013
    %v2015 = vmul.f32 %v2010, 1.442695
    %v2016 = vpow.pop %v2015
    %v2017 = vadd.f32 %v2012, 1.0
    %v2018 = vadd.f32 %v2014, 1.0
    %v2019 = vadd.f32 %v2016, 1.0
    %v2020 = vrcp.pop %v2017
    %v2021 = vmul.f32 1.0, %v2020
    %v2022 = vrcp.pop %v2018
    %v2023 = vmul.f32 1.0, %v2022
    %v2024 = vrcp.pop %v2019
    %v2025 = vmul.f32 1.0, %v2024
    %v2026 = vtanh.pop %v2006
    %v2028 = vrot.slane %v1774, 6
    %v2030 = vmul.f32 %v2023, %v2028
    %v2031 = vmul.f32 %v2021, %v2026
    %v2032 = vadd.f32 %v2030, %v2031
    %v2033 = vtanh.pop %v2032
    %v2034 = vmul.f32 %v2025, %v2033
    %s2035 = scalar_lea.vmem [#allocation8], 12
    %2036 = vst [vmem:[%s2035 - $0x4] sm:$0x30] %v2034
    %v2037 = vld [vmem:[#allocation2 + $0x20] sm:$0xc0]
    %v2038 = vld [vmem:[#allocation2 + $0x28] sm:$0xc0]
    %v2039 = vld [vmem:[#allocation2 + $0x30] sm:$0xc0]
    %v2040 = vld [vmem:[#allocation2 + $0x38] sm:$0xc0]
    %v2041 = vld [vmem:[#allocation6 + $0x100] sm:$0xff]
    %v2042 = vld [vmem:[#allocation6 + $0x108] sm:$0xff]
    %v2043 = vld [vmem:[#allocation6 + $0x110] sm:$0xff]
    %v2044 = vld [vmem:[#allocation6 + $0x118] sm:$0xff]
    %v2045 = vld [vmem:[#allocation6 + $0x120] sm:$0xff]
    %v2046 = vld [vmem:[#allocation6 + $0x128] sm:$0xff]
    %v2047 = vld [vmem:[#allocation6 + $0x130] sm:$0xff]
    %v2048 = vld [vmem:[#allocation6 + $0x138] sm:$0xff]
    %v2049 = vld [vmem:[#allocation6 + $0x140] sm:$0xff]
    %v2050 = vld [vmem:[#allocation6 + $0x148] sm:$0xff]
    %v2051 = vld [vmem:[#allocation6 + $0x150] sm:$0xff]
    %v2052 = vld [vmem:[#allocation6 + $0x158] sm:$0xff]
    %v2053 = vld [vmem:[#allocation6 + $0x160] sm:$0xff]
    %v2054 = vld [vmem:[#allocation6 + $0x168] sm:$0xff]
    %v2055 = vld [vmem:[#allocation6 + $0x170] sm:$0xff]
    %v2056 = vld [vmem:[#allocation6 + $0x178] sm:$0xff]
    %v2057 = vld [vmem:[#allocation6 + $0x180] sm:$0xff]
    %v2058 = vld [vmem:[#allocation6 + $0x188] sm:$0xff]
    %v2059 = vld [vmem:[#allocation6 + $0x190] sm:$0xff]
    %v2060 = vld [vmem:[#allocation6 + $0x198] sm:$0xff]
    %v2061 = vld [vmem:[#allocation6 + $0x1a0] sm:$0xff]
    %v2062 = vld [vmem:[#allocation6 + $0x1a8] sm:$0xff]
    %v2063 = vld [vmem:[#allocation6 + $0x1b0] sm:$0xff]
    %v2064 = vld [vmem:[#allocation6 + $0x1b8] sm:$0xff]
    %v2065 = vld [vmem:[#allocation6 + $0x1c0] sm:$0xff]
    %v2066 = vld [vmem:[#allocation6 + $0x1c8] sm:$0xff]
    %v2067 = vld [vmem:[#allocation6 + $0x1d0] sm:$0xff]
    %v2068 = vld [vmem:[#allocation6 + $0x1d8] sm:$0xff]
    %v2069 = vld [vmem:[#allocation6 + $0x1e0] sm:$0xff]
    %v2070 = vld [vmem:[#allocation6 + $0x1e8] sm:$0xff]
    %v2071 = vld [vmem:[#allocation6 + $0x1f0] sm:$0xff]
    %v2072 = vld [vmem:[#allocation6 + $0x1f8] sm:$0xff]
    %v2073 = vld [vmem:[#allocation6 + $0x200] sm:$0xff]
    %v2074 = vld [vmem:[#allocation6 + $0x208] sm:$0xff]
    %v2075 = vld [vmem:[#allocation6 + $0x210] sm:$0xff]
    %v2076 = vld [vmem:[#allocation6 + $0x218] sm:$0xff]
    %v2077 = vld [vmem:[#allocation6 + $0x220] sm:$0xff]
    %v2078 = vld [vmem:[#allocation6 + $0x228] sm:$0xff]
    %v2079 = vld [vmem:[#allocation6 + $0x230] sm:$0xff]
    %v2080 = vld [vmem:[#allocation6 + $0x238] sm:$0xff]
    %v2081 = vld [vmem:[#allocation6 + $0x240] sm:$0xff]
    %v2082 = vld [vmem:[#allocation6 + $0x248] sm:$0xff]
    %v2083 = vld [vmem:[#allocation6 + $0x250] sm:$0xff]
    %v2084 = vld [vmem:[#allocation6 + $0x258] sm:$0xff]
    %v2085 = vld [vmem:[#allocation6 + $0x260] sm:$0xff]
    %v2086 = vld [vmem:[#allocation6 + $0x268] sm:$0xff]
    %v2087 = vld [vmem:[#allocation6 + $0x270] sm:$0xff]
    %v2088 = vld [vmem:[#allocation6 + $0x278] sm:$0xff]
    %v2089 = vld [vmem:[#allocation6 + $0x280] sm:$0xff]
    %v2090 = vld [vmem:[#allocation6 + $0x288] sm:$0xff]
    %v2091 = vld [vmem:[#allocation6 + $0x290] sm:$0xff]
    %v2092 = vld [vmem:[#allocation6 + $0x298] sm:$0xff]
    %v2093 = vld [vmem:[#allocation6 + $0x2a0] sm:$0xff]
    %v2094 = vld [vmem:[#allocation6 + $0x2a8] sm:$0xff]
    %v2095 = vld [vmem:[#allocation6 + $0x2b0] sm:$0xff]
    %v2096 = vld [vmem:[#allocation6 + $0x2b8] sm:$0xff]
    %v2097 = vld [vmem:[#allocation6 + $0x2c0] sm:$0xff]
    %v2098 = vld [vmem:[#allocation6 + $0x2c8] sm:$0xff]
    %v2099 = vld [vmem:[#allocation6 + $0x2d0] sm:$0xff]
    %v2100 = vld [vmem:[#allocation6 + $0x2d8] sm:$0xff]
    %v2101 = vld [vmem:[#allocation6 + $0x2e0] sm:$0xff]
    %v2102 = vld [vmem:[#allocation6 + $0x2e8] sm:$0xff]
    %v2103 = vld [vmem:[#allocation6 + $0x2f0] sm:$0xff]
    %v2104 = vld [vmem:[#allocation6 + $0x2f8] sm:$0xff]
    %v2106 = vrot.slane %v2034, 4
    %2108 = vmatprep.subr.mxu0 %v2042
    %2109 = vmatpush1.msra.mxu0 %v2041
    %2110 = vmatprep.subr.mxu0 %v2046
    %2111 = vmatpush1.msra.mxu0 %v2045
    %2112 = vmatprep.subr.mxu0 %v2050
    %2113 = vmatpush1.msra.mxu0 %v2049
    %2114 = vmatprep.subr.mxu0 %v2054
    %2115 = vmatpush1.msra.mxu0 %v2053
    %2116 = vmatprep.subr.mxu0 %v2058
    %2117 = vmatpush1.msra.mxu0 %v2057
    %2118 = vmatprep.subr.mxu0 %v2062
    %2119 = vmatpush1.msra.mxu0 %v2061
    %2120 = vmatprep.subr.mxu0 %v2066
    %2121 = vmatpush1.msra.mxu0 %v2065
    %2122 = vmatprep.subr.mxu0 %v2070
    %2123 = vmatpush1.msra.mxu0 %v2069
    %2124 = vmatprep.subr.mxu0 %v2074
    %2125 = vmatpush1.msra.mxu0 %v2073
    %2126 = vmatprep.subr.mxu0 %v2078
    %2127 = vmatpush1.msra.mxu0 %v2077
    %2128 = vmatprep.subr.mxu0 %v2082
    %2129 = vmatpush1.msra.mxu0 %v2081
    %2130 = vmatprep.subr.mxu0 %v2086
    %2131 = vmatpush1.msra.mxu0 %v2085
    %2132 = vmatprep.subr.mxu0 %v2090
    %2133 = vmatpush1.msra.mxu0 %v2089
    %2134 = vmatprep.subr.mxu0 %v2094
    %2135 = vmatpush1.msra.mxu0 %v2093
    %2136 = vmatprep.subr.mxu0 %v2098
    %2137 = vmatpush1.msra.mxu0 %v2097
    %2138 = vmatprep.subr.mxu0 %v2102
    %2139 = vmatpush1.msra.mxu0 %v2101
    %2140 = vmatprep.subr.mxu0 0.0
    %2141 = vmatpush1.msra.mxu0 0.0
    %2142 = vmatprep.subr.mxu0 0.0
    %2143 = vmatpush1.msra.mxu0 0.0
    %2144 = vmatprep.subr.mxu0 0.0
    %2145 = vmatpush1.msra.mxu0 0.0
    %2146 = vmatprep.subr.mxu0 0.0
    %2147 = vmatpush1.msra.mxu0 0.0
    %2148 = vmatprep.subr.mxu0 0.0
    %2149 = vmatpush1.msra.mxu0 0.0
    %2150 = vmatprep.subr.mxu0 0.0
    %2151 = vmatpush1.msra.mxu0 0.0
    %2152 = vmatprep.subr.mxu0 0.0
    %2153 = vmatpush1.msra.mxu0 0.0
    %2154 = vmatprep.subr.mxu0 0.0
    %2155 = vmatpush1.msra.mxu0 0.0
    %2156 = vmatprep.subr.mxu0 0.0
    %2157 = vmatpush1.msra.mxu0 0.0
    %2158 = vmatprep.subr.mxu0 0.0
    %2159 = vmatpush1.msra.mxu0 0.0
    %2160 = vmatprep.subr.mxu0 0.0
    %2161 = vmatpush1.msra.mxu0 0.0
    %2162 = vmatprep.subr.mxu0 0.0
    %2163 = vmatpush1.msra.mxu0 0.0
    %2164 = vmatprep.subr.mxu0 0.0
    %2165 = vmatpush1.msra.mxu0 0.0
    %2166 = vmatprep.subr.mxu0 0.0
    %2167 = vmatpush1.msra.mxu0 0.0
    %2168 = vmatprep.subr.mxu0 0.0
    %2169 = vmatpush1.msra.mxu0 0.0
    %2170 = vmatprep.subr.mxu0 0.0
    %2171 = vmatpush1.msra.mxu0 0.0
    %2172 = vmatprep.mubr.f32.mxu0 0.0
    %2173 = vmatmul.mubr.f32.gmra.mrb[0].mxu0 %v2106
    %v2174 = vpop.f32.mrb[0].mxu0
    %v2175 = vadd.f32 0.0, %v2174
    %v2176 = vpop.f32.mrb[0].mxu0
    %v2177 = vadd.f32 0.0, %v2176
    %2178 = vdwg.mxu0
    %2179 = vmatprep.subr.mxu0 %v2044
    %2180 = vmatpush1.msra.mxu0 %v2043
    %2181 = vmatprep.subr.mxu0 %v2048
    %2182 = vmatpush1.msra.mxu0 %v2047
    %2183 = vmatprep.subr.mxu0 %v2052
    %2184 = vmatpush1.msra.mxu0 %v2051
    %2185 = vmatprep.subr.mxu0 %v2056
    %2186 = vmatpush1.msra.mxu0 %v2055
    %2187 = vmatprep.subr.mxu0 %v2060
    %2188 = vmatpush1.msra.mxu0 %v2059
    %2189 = vmatprep.subr.mxu0 %v2064
    %2190 = vmatpush1.msra.mxu0 %v2063
    %2191 = vmatprep.subr.mxu0 %v2068
    %2192 = vmatpush1.msra.mxu0 %v2067
    %2193 = vmatprep.subr.mxu0 %v2072
    %2194 = vmatpush1.msra.mxu0 %v2071
    %2195 = vmatprep.subr.mxu0 %v2076
    %2196 = vmatpush1.msra.mxu0 %v2075
    %2197 = vmatprep.subr.mxu0 %v2080
    %2198 = vmatpush1.msra.mxu0 %v2079
    %2199 = vmatprep.subr.mxu0 %v2084
    %2200 = vmatpush1.msra.mxu0 %v2083
    %2201 = vmatprep.subr.mxu0 %v2088
    %2202 = vmatpush1.msra.mxu0 %v2087
    %2203 = vmatprep.subr.mxu0 %v2092
    %2204 = vmatpush1.msra.mxu0 %v2091
    %2205 = vmatprep.subr.mxu0 %v2096
    %2206 = vmatpush1.msra.mxu0 %v2095
    %2207 = vmatprep.subr.mxu0 %v2100
    %2208 = vmatpush1.msra.mxu0 %v2099
    %2209 = vmatprep.subr.mxu0 %v2104
    %2210 = vmatpush1.msra.mxu0 %v2103
    %2211 = vmatprep.subr.mxu0 0.0
    %2212 = vmatpush1.msra.mxu0 0.0
    %2213 = vmatprep.subr.mxu0 0.0
    %2214 = vmatpush1.msra.mxu0 0.0
    %2215 = vmatprep.subr.mxu0 0.0
    %2216 = vmatpush1.msra.mxu0 0.0
    %2217 = vmatprep.subr.mxu0 0.0
    %2218 = vmatpush1.msra.mxu0 0.0
    %2219 = vmatprep.subr.mxu0 0.0
    %2220 = vmatpush1.msra.mxu0 0.0
    %2221 = vmatprep.subr.mxu0 0.0
    %2222 = vmatpush1.msra.mxu0 0.0
    %2223 = vmatprep.subr.mxu0 0.0
    %2224 = vmatpush1.msra.mxu0 0.0
    %2225 = vmatprep.subr.mxu0 0.0
    %2226 = vmatpush1.msra.mxu0 0.0
    %2227 = vmatprep.subr.mxu0 0.0
    %2228 = vmatpush1.msra.mxu0 0.0
    %2229 = vmatprep.subr.mxu0 0.0
    %2230 = vmatpush1.msra.mxu0 0.0
    %2231 = vmatprep.subr.mxu0 0.0
    %2232 = vmatpush1.msra.mxu0 0.0
    %2233 = vmatprep.subr.mxu0 0.0
    %2234 = vmatpush1.msra.mxu0 0.0
    %2235 = vmatprep.subr.mxu0 0.0
    %2236 = vmatpush1.msra.mxu0 0.0
    %2237 = vmatprep.subr.mxu0 0.0
    %2238 = vmatpush1.msra.mxu0 0.0
    %2239 = vmatprep.subr.mxu0 0.0
    %2240 = vmatpush1.msra.mxu0 0.0
    %2241 = vmatprep.subr.mxu0 0.0
    %2242 = vmatpush1.msra.mxu0 0.0
    %2243 = vmatprep.mubr.f32.mxu0 0.0
    %2244 = vmatmul.mubr.f32.gmra.mrb[0].mxu0 %v2106
    %v2245 = vpop.f32.mrb[0].mxu0
    %v2246 = vadd.f32 0.0, %v2245
    %v2247 = vpop.f32.mrb[0].mxu0
    %v2248 = vadd.f32 0.0, %v2247
    %2249 = vdwg.mxu0
    %v2254 = vrot.slane %v2175, 2
    %v2255 = vrot.slane %v2177, 2
    %v2256 = vrot.slane %v2246, 2
    %v2257 = vrot.slane %v2248, 2
    %v2262 = vadd.f32 %v2037, %v2254
    %v2263 = vadd.f32 %v2038, %v2255
    %v2264 = vadd.f32 %v2039, %v2256
    %v2265 = vadd.f32 %v2040, %v2257
    %v2266 = vxor.u32 %v2262, 2147483648
    %v2267 = vxor.u32 %v2263, 2147483648
    %v2268 = vxor.u32 %v2265, 2147483648
    %v2269 = vmul.f32 %v2266, 1.442695
    %v2270 = vpow.pop %v2269
    %v2271 = vmul.f32 %v2267, 1.442695
    %v2272 = vpow.pop %v2271
    %v2273 = vmul.f32 %v2268, 1.442695
    %v2274 = vpow.pop %v2273
    %v2275 = vadd.f32 %v2270, 1.0
    %v2276 = vadd.f32 %v2272, 1.0
    %v2277 = vadd.f32 %v2274, 1.0
    %v2278 = vrcp.pop %v2275
    %v2279 = vmul.f32 1.0, %v2278
    %v2280 = vrcp.pop %v2276
    %v2281 = vmul.f32 1.0, %v2280
    %v2282 = vrcp.pop %v2277
    %v2283 = vmul.f32 1.0, %v2282
    %v2284 = vtanh.pop %v2264
    %v2286 = vrot.slane %v2032, 6
    %v2288 = vmul.f32 %v2281, %v2286
    %v2289 = vmul.f32 %v2279, %v2284
    %v2290 = vadd.f32 %v2288, %v2289
    %v2291 = vtanh.pop %v2290
    %v2292 = vmul.f32 %v2283, %v2291
    %s2293 = scalar_lea.vmem [#allocation8], 14
    %2294 = vst [vmem:[%s2293 - $0x6] sm:$0xc0] %v2292
    // Predicated region
    $region22: #{tpu_custom_call.1} parent=1 // pred_check
      _
    $region23: #{tpu_custom_call.1} parent=1 // pred_check_branch
      %2296 = sbr.rel (0) target = $region25
    $region24: #{tpu_custom_call.1} parent=1 // pred_region
      %s2298 = ssub.s32 256, 256
      %2299 = vsyncadd [#allocation5], %s2298
      %s2300 = sshll.u32 [#allocation8], 4
      %s2301 = int_to_ptr.vmem [resolvable:$true] %s2300
      %2306 = dma.vmem_to_hbm [thread:$0]  %s2301, 256, %s3, [#allocation5], 32, 32, 2
    $region25: #{tpu_custom_call.1} parent=1 // pred_fallthru
      _
    // Predicated region
    $region26: #{tpu_custom_call.1} parent=1 // pred_check
      _
    $region27: #{tpu_custom_call.1} parent=1 // pred_check_branch
      %2308 = sbr.rel (0) target = $region29
    $region28: #{tpu_custom_call.1} parent=1 // pred_region
      %2309 = dma.done [#allocation5], 256
    $region29: #{tpu_custom_call.1} parent=1 // pred_fallthru
      _
    %2310 = vsyncpa [#allocation4], 1
    %2311 = vsyncpa [#allocation7], 1
    %2312 = vsyncpa [#allocation5], 1

</llo_original>
